<compile_context>
chip_gen: v7x
topology: tpu7x:2x2x1
jax: 0.10.0
libtpu: 0.0.40
codegen_flags: <defaults>
</compile_context>

<pallas_src>
import jax
import jax.numpy as jnp
from jax.experimental import pallas as pl
from jax.experimental.pallas import tpu as pltpu


def _attention_pooling_kernel(x_ref, mask_ref, w1_ref, b1_ref, w2_ref, b2_ref,
                              pooled_ref, alpha_ref):
    # x_ref:      (R, Hp)   R = tb*S flattened rows of this batch tile
    # mask_ref:   (1, R)    attention mask, lane-dense row (1.0 = keep)
    # w1_ref:     (Hp, Hp)  fc1 weight, pre-transposed (in, out)
    # b1_ref:     (1, Hp)   fc1 bias
    # w2_ref:     (1, Hp)   fc2 weight (torch (out=1, in) layout is already a row)
    # b2_ref:     (1,)      fc2 bias, scalar in SMEM
    # pooled_ref: (tb, Hp)
    # alpha_ref:  (1, R)    normalized attention weights, lane-dense row
    f32 = jnp.float32
    tb, _ = pooled_ref.shape
    r = alpha_ref.shape[-1]
    s = r // tb

    x = x_ref[...]                                                          # (R, Hp)

    # fc1 -> tanh : one MXU pass over all R rows (tanh on the EUP).
    # (For large Hp on v6e/v7x a bf16 activation path here halves EUP work;
    # kept f32 so the demo matches the PyTorch reference tightly.)
    e = jnp.tanh(
        jnp.dot(x, w1_ref[...], preferred_element_type=f32) + b1_ref[...])  # (R, Hp)

    # fc2 directly in row orientation (NT matmul, contract both last dims) —
    # alpha stays lane-dense end to end, no transposes anywhere.
    s_row = jax.lax.dot_general(w2_ref[...], e, (((1,), (1,)), ((), ())),
                                preferred_element_type=f32)                 # (1, R)
    a_row = jnp.exp(s_row + b2_ref[0]) * mask_ref[...]                      # (1, R)

    # Segment (per-batch-row) 0/1 matrices rebuilt in-kernel from iota — no
    # HBM inputs, no integer division (range compare against group start/end).
    lane = jax.lax.broadcasted_iota(jnp.int32, (tb, r), 1)
    start = jax.lax.broadcasted_iota(jnp.int32, (tb, r), 0) * s
    seg = jnp.logical_and(lane >= start, lane < start + s).astype(f32)      # (tb, R)

    lane_t = jax.lax.broadcasted_iota(jnp.int32, (r, tb), 0)
    start_t = jax.lax.broadcasted_iota(jnp.int32, (r, tb), 1) * s
    seg_t = jnp.logical_and(lane_t >= start_t,
                            lane_t < start_t + s).astype(f32)               # (R, tb)

    # Per-batch softmax denominators and their broadcast back to lanes, both
    # as small NN matmuls (no column vectors, no transposes).
    denom = jnp.dot(a_row, seg_t, preferred_element_type=f32) + 1e-8        # (1, tb)
    r_row = pl.reciprocal(denom, approx=True)                               # (1, tb) EUP
    r_lanes = jnp.dot(r_row, seg, preferred_element_type=f32)               # (1, R)

    alpha_row = a_row * r_lanes                                             # (1, R)

    # pooled[b, :] = sum_s alpha[b, s] * x[b*S + s, :]  ==  (seg * alpha) @ x
    pooled = jnp.dot(seg * alpha_row, x.astype(f32),
                     preferred_element_type=f32)                            # (tb, Hp)

    pooled_ref[...] = pooled.astype(pooled_ref.dtype)
    alpha_ref[...] = alpha_row.astype(alpha_ref.dtype)


def _pick_batch_tile(batch, seq, hp, itemsize, *, target_rows=256,
                     min_steps=4, vmem_budget=24 * 1024 * 1024):
    """Batches per grid step: multiple of 8 sublanes, ~256 rows per step
    (v6e/v7x MXU depth), capped by a VMEM budget, backed off so the grid has a
    few steps to pipeline (and to feed both v7x TensorCores) while keeping the
    alpha row >= 128 lanes."""
    tb = 8 * max(1, pl.cdiv(pl.cdiv(target_rows, seq), 8))

    def vmem_bytes(t):
        rows = t * seq
        return (2 * rows * hp * itemsize           # x tile (double buffered)
                + 2 * (2 * rows + t * hp) * 4      # mask + alpha rows, pooled
                + (hp * hp + 2 * hp + 8) * 4)      # weights (single buffered)

    while tb > 8 and vmem_bytes(tb) > vmem_budget:
        tb -= 8
    while tb > 8 and pl.cdiv(batch, tb) < min_steps and (tb - 8) * seq >= 128:
        tb -= 8
    return tb


def attention_pooling(x, w1, b1, w2, b2, attn_mask=None, *, batch_tile=None):
    """x: (B, S, H). w1: (H, H) torch (out, in) layout. b1: (H,).
    w2: (1, H) torch layout. b2: (1,). attn_mask: (B, S) or None.
    Returns pooled (B, H) and alpha (B, S) — same as AttentionPooling.forward."""
    B, S, H = x.shape
    if attn_mask is None:
        attn_mask = jnp.ones((B, S), dtype=jnp.float32)

    # Lane-align the hidden dim: full MXU columns and unmasked pooled stores.
    Hp = 128 * pl.cdiv(H, 128)

    tb = batch_tile or _pick_batch_tile(B, S, Hp, jnp.dtype(x.dtype).itemsize)
    bp = tb * pl.cdiv(B, tb)
    R = tb * S
    G = bp // tb

    # ---- layout plumbing (HBM-side, one-time / free reshapes) ----
    if Hp != H:
        x = jnp.pad(x, ((0, 0), (0, 0), (0, Hp - H)))
    if bp != B:
        x = jnp.pad(x, ((0, bp - B), (0, 0), (0, 0)))
        attn_mask = jnp.pad(attn_mask, ((0, bp - B), (0, 0)))   # pad rows masked out
    x2 = x.reshape(bp * S, Hp)                                   # flat rows
    mask_rows = attn_mask.reshape(G, 1, R).astype(jnp.float32)   # lane-dense rows

    w1_t = jnp.pad(jnp.transpose(w1), ((0, Hp - H), (0, Hp - H))).astype(jnp.float32)
    b1_row = jnp.pad(b1.reshape(1, H), ((0, 0), (0, Hp - H))).astype(jnp.float32)
    w2_row = jnp.pad(w2.reshape(1, H), ((0, 0), (0, Hp - H))).astype(jnp.float32)
    b2_s = b2.reshape(1).astype(jnp.float32)

    # Single-buffer the grid-invariant weights once they are big enough to
    # matter (saves a full extra copy of w1 in VMEM on large H).
    # TODO(synk): add a K-tiling grid axis over Hp for fc1 when Hp*Hp*4
    # approaches the VMEM budget (H >= ~4096 on v7x).
    weight_mode = ({} if Hp * Hp * 4 <= (2 << 20)
                   else dict(pipeline_mode=pl.Buffered(1)))

    grid_spec = pltpu.PrefetchScalarGridSpec(
        num_scalar_prefetch=0,
        grid=(G,),
        in_specs=[
            pl.BlockSpec((R, Hp), lambda i: (i, 0)),                  # x rows
            pl.BlockSpec((None, 1, R), lambda i: (i, 0, 0)),          # mask row
            pl.BlockSpec((Hp, Hp), lambda i: (0, 0), **weight_mode),  # w1^T
            pl.BlockSpec((1, Hp), lambda i: (0, 0), **weight_mode),   # b1
            pl.BlockSpec((1, Hp), lambda i: (0, 0), **weight_mode),   # w2 row
            pl.BlockSpec(memory_space=pltpu.MemorySpace.SMEM),        # b2 scalar
        ],
        out_specs=[
            pl.BlockSpec((tb, Hp), lambda i: (i, 0)),                 # pooled
            pl.BlockSpec((None, 1, R), lambda i: (i, 0, 0)),          # alpha row
        ],
    )

    pooled, alpha_rows = pl.pallas_call(
        _attention_pooling_kernel,
        out_shape=(
            jax.ShapeDtypeStruct((bp, Hp), x.dtype),
            jax.ShapeDtypeStruct((G, 1, R), x.dtype),
        ),
        grid_spec=grid_spec,
        compiler_params=pltpu.CompilerParams(
            dimension_semantics=("parallel",),
            vmem_limit_bytes=32 * 1024 * 1024,
        ),
    )(x2, mask_rows, w1_t, b1_row, w2_row, b2_s)

    alpha = alpha_rows.reshape(bp, S)
    return pooled[:B, :H], alpha[:B]


def _reference(x, w1, b1, w2, b2, attn_mask=None):
    e = jnp.tanh(jnp.einsum("bsh,oh->bso", x, w1) + b1)
    alpha = jnp.exp(jnp.einsum("bsh,oh->bso", e, w2) + b2)        # (B, S, 1)
    if attn_mask is not None:
        alpha = alpha * attn_mask[:, :, None]
    alpha = alpha / (jnp.sum(alpha, axis=1, keepdims=True) + 1e-8)
    pooled = jnp.einsum("bsh,bsl->bhl", x, alpha)[..., 0]
    return pooled, alpha[..., 0]


if __name__ == "__main__":
    # B=60 exercises batch padding (-> 64 = 4 tiles of 16), H=32 exercises the
    # hidden-dim lane padding (-> 128); tb=16, S=16 gives R=256 rows per step
    # and a grid of 4 "parallel" steps (2 per v7x TensorCore).
    B, S, H = 60, 16, 32
    key = jax.random.PRNGKey(0)
    k_x, k_w1, k_b1, k_w2, k_b2, k_m = jax.random.split(key, 6)

    x = jax.random.normal(k_x, (B, S, H), dtype=jnp.float32)
    # nn.Linear weights of the module: weight ~ N(0, 0.2); biases kept small
    # (module init zeroes them, small values exercise the bias paths).
    w1 = 0.2 * jax.random.normal(k_w1, (H, H), dtype=jnp.float32)   # (out, in)
    b1 = 0.1 * jax.random.normal(k_b1, (H,), dtype=jnp.float32)
    w2 = 0.2 * jax.random.normal(k_w2, (1, H), dtype=jnp.float32)   # (out, in)
    b2 = 0.1 * jax.random.normal(k_b2, (1,), dtype=jnp.float32)
    attn_mask = (jax.random.uniform(k_m, (B, S)) > 0.3).astype(jnp.float32)

    pooled, alpha = attention_pooling(x, w1, b1, w2, b2, attn_mask)
    jax.block_until_ready((pooled, alpha))

    ref_pooled, ref_alpha = _reference(x, w1, b1, w2, b2, attn_mask)
    assert pooled.shape == (B, H) and alpha.shape == (B, S)
    # 5e-3 tolerance: the softmax normalization uses the EUP approximate
    # reciprocal (pl.reciprocal(approx=True)).
    assert jnp.allclose(pooled, ref_pooled, atol=5e-3, rtol=5e-3), \
        float(jnp.max(jnp.abs(pooled - ref_pooled)))
    assert jnp.allclose(alpha, ref_alpha, atol=5e-3, rtol=5e-3), \
        float(jnp.max(jnp.abs(alpha - ref_alpha)))

    print("KERNEL_OK")
</pallas_src>

<mosaic_0001>
module attributes {stable_mosaic.version = 11 : i64} {
  func.func @_attention_pooling_kernel(%arg0: i32, %arg1: memref<256x128xf32, #tpu.memory_space<vmem>>, %arg2: memref<1x1x256xf32, #tpu.memory_space<vmem>>, %arg3: memref<128x128xf32, #tpu.memory_space<vmem>>, %arg4: memref<1x128xf32, #tpu.memory_space<vmem>>, %arg5: memref<1x128xf32, #tpu.memory_space<vmem>>, %arg6: memref<1xf32, #tpu.memory_space<smem>>, %arg7: memref<16x128xf32, #tpu.memory_space<vmem>>, %arg8: memref<1x1x256xf32, #tpu.memory_space<vmem>>) attributes {dimension_semantics = [#tpu.dimension_semantics<parallel>], iteration_bounds = array<i64: 4>, scalar_prefetch = 0 : i64, scratch_operands = 0 : i64, tpu.core_type = #tpu.core_type<tc>, window_params = [{transform_indices = @transform_0, window_bounds = array<i64: 256, 128>}, {transform_indices = @transform_1, window_bounds = array<i64: 1, 1, 256>}, {pipeline_mode = #tpu.pipeline_mode<synchronous>, transform_indices = @transform_2, window_bounds = array<i64: 128, 128>}, {pipeline_mode = #tpu.pipeline_mode<synchronous>, transform_indices = @transform_3, window_bounds = array<i64: 1, 128>}, {pipeline_mode = #tpu.pipeline_mode<synchronous>, transform_indices = @transform_4, window_bounds = array<i64: 1, 128>}, {transform_indices = @transform_5, window_bounds = array<i64: 1>}, {transform_indices = @transform_6, window_bounds = array<i64: 16, 128>}, {transform_indices = @transform_7, window_bounds = array<i64: 1, 1, 256>}]} {
    %c0 = arith.constant 0 : index
    %c0_0 = arith.constant 0 : index
    %0 = vector.load %arg1[%c0, %c0_0] : memref<256x128xf32, #tpu.memory_space<vmem>>, vector<256x128xf32>
    %c0_1 = arith.constant 0 : index
    %c0_2 = arith.constant 0 : index
    %1 = vector.load %arg3[%c0_1, %c0_2] : memref<128x128xf32, #tpu.memory_space<vmem>>, vector<128x128xf32>
    %cst = arith.constant dense<0.000000e+00> : vector<256x128xf32>
    %2 = tpu.matmul %0, %1, %cst {dimension_numbers = #tpu.dot_dimension_numbers<[1], [0], [0], [1], [0, 0, 1, 1], [], []>} : vector<256x128xf32>, vector<128x128xf32>, vector<256x128xf32> -> vector<256x128xf32>
    %c0_3 = arith.constant 0 : index
    %c0_4 = arith.constant 0 : index
    %3 = vector.load %arg4[%c0_3, %c0_4] : memref<1x128xf32, #tpu.memory_space<vmem>>, vector<1x128xf32>
    %4 = vector.broadcast %3 : vector<1x128xf32> to vector<256x128xf32>
    %5 = arith.addf %2, %4 : vector<256x128xf32>
    %6 = math.tanh %5 : vector<256x128xf32>
    %c0_5 = arith.constant 0 : index
    %c0_6 = arith.constant 0 : index
    %7 = vector.load %arg5[%c0_5, %c0_6] : memref<1x128xf32, #tpu.memory_space<vmem>>, vector<1x128xf32>
    %cst_7 = arith.constant dense<0.000000e+00> : vector<1x256xf32>
    %8 = tpu.matmul %7, %6, %cst_7 {dimension_numbers = #tpu.dot_dimension_numbers<[1], [1], [0], [0], [0, 0, 1, 0], [], []>} : vector<1x128xf32>, vector<256x128xf32>, vector<1x256xf32> -> vector<1x256xf32>
    %c0_8 = arith.constant 0 : index
    %9 = memref.load %arg6[%c0_8] : memref<1xf32, #tpu.memory_space<smem>>
    %10 = vector.broadcast %9 : f32 to vector<1x256xf32>
    %11 = arith.addf %8, %10 : vector<1x256xf32>
    %12 = math.exp %11 : vector<1x256xf32>
    %c0_9 = arith.constant 0 : index
    %c0_10 = arith.constant 0 : index
    %c0_11 = arith.constant 0 : index
    %13 = vector.load %arg2[%c0_9, %c0_10, %c0_11] : memref<1x1x256xf32, #tpu.memory_space<vmem>>, vector<1x1x256xf32>
    %14 = vector.shape_cast %13 : vector<1x1x256xf32> to vector<1x256xf32>
    %15 = arith.mulf %12, %14 : vector<1x256xf32>
    %16 = tpu.iota {dimensions = array<i32: 1>} : vector<16x256xi32>
    %17 = tpu.iota {dimensions = array<i32: 0>} : vector<16x256xi32>
    %c16_i32 = arith.constant 16 : i32
    %18 = vector.broadcast %c16_i32 : i32 to vector<16x256xi32>
    %19 = arith.muli %17, %18 : vector<16x256xi32>
    %20 = arith.cmpi sge, %16, %19 : vector<16x256xi32>
    %c16_i32_12 = arith.constant 16 : i32
    %21 = vector.broadcast %c16_i32_12 : i32 to vector<16x256xi32>
    %22 = arith.addi %19, %21 : vector<16x256xi32>
    %23 = arith.cmpi slt, %16, %22 : vector<16x256xi32>
    %24 = arith.andi %20, %23 : vector<16x256xi1>
    %25 = arith.extui %24 : vector<16x256xi1> to vector<16x256xi32>
    %26 = arith.sitofp %25 : vector<16x256xi32> to vector<16x256xf32>
    %27 = tpu.iota {dimensions = array<i32: 0>} : vector<256x16xi32>
    %28 = tpu.iota {dimensions = array<i32: 1>} : vector<256x16xi32>
    %c16_i32_13 = arith.constant 16 : i32
    %29 = vector.broadcast %c16_i32_13 : i32 to vector<256x16xi32>
    %30 = arith.muli %28, %29 : vector<256x16xi32>
    %31 = arith.cmpi sge, %27, %30 : vector<256x16xi32>
    %c16_i32_14 = arith.constant 16 : i32
    %32 = vector.broadcast %c16_i32_14 : i32 to vector<256x16xi32>
    %33 = arith.addi %30, %32 : vector<256x16xi32>
    %34 = arith.cmpi slt, %27, %33 : vector<256x16xi32>
    %35 = arith.andi %31, %34 : vector<256x16xi1>
    %36 = arith.extui %35 : vector<256x16xi1> to vector<256x16xi32>
    %37 = arith.sitofp %36 : vector<256x16xi32> to vector<256x16xf32>
    %cst_15 = arith.constant dense<0.000000e+00> : vector<1x16xf32>
    %38 = tpu.matmul %15, %37, %cst_15 {dimension_numbers = #tpu.dot_dimension_numbers<[1], [0], [0], [1], [0, 0, 1, 1], [], []>} : vector<1x256xf32>, vector<256x16xf32>, vector<1x16xf32> -> vector<1x16xf32>
    %cst_16 = arith.constant 9.99999993E-9 : f32
    %39 = vector.broadcast %cst_16 : f32 to vector<1x16xf32>
    %40 = arith.addf %38, %39 : vector<1x16xf32>
    %41 = tpu.reciprocal %40 {approx = true} : vector<1x16xf32> -> vector<1x16xf32>
    %cst_17 = arith.constant dense<0.000000e+00> : vector<1x256xf32>
    %42 = tpu.matmul %41, %26, %cst_17 {dimension_numbers = #tpu.dot_dimension_numbers<[1], [0], [0], [1], [0, 0, 1, 1], [], []>} : vector<1x16xf32>, vector<16x256xf32>, vector<1x256xf32> -> vector<1x256xf32>
    %43 = arith.mulf %15, %42 : vector<1x256xf32>
    %44 = vector.broadcast %43 : vector<1x256xf32> to vector<16x256xf32>
    %45 = arith.mulf %26, %44 : vector<16x256xf32>
    %cst_18 = arith.constant dense<0.000000e+00> : vector<16x128xf32>
    %46 = tpu.matmul %45, %0, %cst_18 {dimension_numbers = #tpu.dot_dimension_numbers<[1], [0], [0], [1], [0, 0, 1, 1], [], []>} : vector<16x256xf32>, vector<256x128xf32>, vector<16x128xf32> -> vector<16x128xf32>
    %c0_19 = arith.constant 0 : index
    %c0_20 = arith.constant 0 : index
    %47 = vector.load %arg7[%c0_19, %c0_20] : memref<16x128xf32, #tpu.memory_space<vmem>>, vector<16x128xf32>
    tpu.vector_store %arg7[%c0_19, %c0_20], %46 {strides = array<i32>} : memref<16x128xf32, #tpu.memory_space<vmem>>, vector<16x128xf32>,
    %c0_21 = arith.constant 0 : index
    %c0_22 = arith.constant 0 : index
    %c0_23 = arith.constant 0 : index
    %48 = vector.load %arg8[%c0_21, %c0_22, %c0_23] : memref<1x1x256xf32, #tpu.memory_space<vmem>>, vector<1x1x256xf32>
    %49 = vector.shape_cast %48 : vector<1x1x256xf32> to vector<1x256xf32>
    %50 = vector.shape_cast %43 : vector<1x256xf32> to vector<1x1x256xf32>
    tpu.vector_store %arg8[%c0_21, %c0_22, %c0_23], %50 {strides = array<i32>} : memref<1x1x256xf32, #tpu.memory_space<vmem>>, vector<1x1x256xf32>,
    return
  }
  func.func @transform_0(%arg0: i32) -> (i32, i32) {
    %c0_i32 = arith.constant 0 : i32
    %c0_i32_0 = arith.constant 0 : i32
    return %arg0, %c0_i32 : i32, i32
  }
  func.func @transform_1(%arg0: i32) -> (i32, i32, i32) {
    %c0_i32 = arith.constant 0 : i32
    %c0_i32_0 = arith.constant 0 : i32
    %c0_i32_1 = arith.constant 0 : i32
    return %arg0, %c0_i32, %c0_i32_0 : i32, i32, i32
  }
  func.func @transform_2(%arg0: i32) -> (i32, i32) {
    %c0_i32 = arith.constant 0 : i32
    %c0_i32_0 = arith.constant 0 : i32
    %c0_i32_1 = arith.constant 0 : i32
    return %c0_i32, %c0_i32_0 : i32, i32
  }
  func.func @transform_3(%arg0: i32) -> (i32, i32) {
    %c0_i32 = arith.constant 0 : i32
    %c0_i32_0 = arith.constant 0 : i32
    %c0_i32_1 = arith.constant 0 : i32
    return %c0_i32, %c0_i32_0 : i32, i32
  }
  func.func @transform_4(%arg0: i32) -> (i32, i32) {
    %c0_i32 = arith.constant 0 : i32
    %c0_i32_0 = arith.constant 0 : i32
    %c0_i32_1 = arith.constant 0 : i32
    return %c0_i32, %c0_i32_0 : i32, i32
  }
  func.func @transform_5(%arg0: i32) -> i32 {
    %c0_i32 = arith.constant 0 : i32
    %c0_i32_0 = arith.constant 0 : i32
    return %c0_i32 : i32
  }
  func.func @transform_6(%arg0: i32) -> (i32, i32) {
    %c0_i32 = arith.constant 0 : i32
    %c0_i32_0 = arith.constant 0 : i32
    return %arg0, %c0_i32 : i32, i32
  }
  func.func @transform_7(%arg0: i32) -> (i32, i32, i32) {
    %c0_i32 = arith.constant 0 : i32
    %c0_i32_0 = arith.constant 0 : i32
    %c0_i32_1 = arith.constant 0 : i32
    return %arg0, %c0_i32, %c0_i32_0 : i32, i32, i32
  }
}

</mosaic_0001>

<llo_original>
// kernel: tpu_custom_call.1
$region0: #{tpu_custom_call.1}
  #allocation0 [shape = 'u32[]', space=smem, size = 0x4, offset = 0x4, fixed_abs, tag = 'smem constant byte address 0x4 - core index']
  #allocation1 [shape = 'u32[144,128]{1,0:T(1,128)}', space=vmem, size = 0x12000, scoped, tag = 'internal scratch']
  #allocation2 [shape = 'f32[1]{0:T(128)S(6)}', space=smem, size = 0x200, scoped, tag = 'scoped memory for tpu_custom_call.1']
  %s0 = inlined_call_operand.hbm [shape: f32[1024,128], index: 0, kind: input, shape index: {}]
  %s1 = inlined_call_operand.hbm [shape: f32[4,1,256], index: 1, kind: input, shape index: {}]
  %s2 = inlined_call_operand.hbm [shape: f32[128,128], index: 2, kind: input, shape index: {}]
  %s3 = inlined_call_operand.vmem [shape: f32[1,128], index: 3, kind: input, shape index: {}]
  %s4 = inlined_call_operand.vmem [shape: f32[1,128], index: 4, kind: input, shape index: {}]
  %s5 = inlined_call_operand.<no memory space> [shape: f32[1], index: 5, kind: input, shape index: {}]
  %s6 = inlined_call_operand.hbm [shape: f32[64,128], index: 6, kind: output, shape index: {0}]
  %s7 = inlined_call_operand.hbm [shape: f32[4,1,256], index: 7, kind: output, shape index: {1}]
  %8 = xla_tuple %s6, %s7
  %s9 = sld [smem:[#allocation0]]
  $region77: #{tpu_custom_call.1} parent=0
    _
  %s11 = ssub.s32 1, %s9
  %s12 = scalar_select 0, %s11, %s9
  %13 = sst [smem:[#allocation2]] %s5
  $region1: #{tpu_custom_call.1} parent=0
    #allocation3 [shape = 'u8[262144]{0}', space=vmem, size = 0x40000, scoped, tag = 'input window, operand 0']
    #allocation4 [shape = 's32[2]{0}', space=sflag, size = 0x8, scoped, tag = 'scoped memory for tpu_custom_call.1']
    #allocation5 [shape = 's32[2]{0}', space=sflag, size = 0x8, scoped, tag = 'scoped memory for tpu_custom_call.1']
    #allocation6 [shape = 'u8[2048]{0}', space=vmem, size = 0x800, scoped, tag = 'input window, operand 1']
    #allocation7 [shape = 's32[2]{0}', space=sflag, size = 0x8, scoped, tag = 'scoped memory for tpu_custom_call.1']
    #allocation8 [shape = 'u8[65536]{0}', space=vmem, size = 0x10000, scoped, tag = 'input window, operand 2, single buffered']
    #allocation9 [shape = 'u8[16384]{0}', space=vmem, size = 0x4000, scoped, tag = 'output window, operand 0']
    #allocation10 [shape = 'u8[2048]{0}', space=vmem, size = 0x800, scoped, tag = 'output window, operand 1']
    #allocation11 [shape = 's32[2]{0}', space=sflag, size = 0x8, scoped, tag = 'scoped memory for tpu_custom_call.1']
    %14 = vsyncpa [#allocation4], 0
    %s15 = scalar_lea.sflag [#allocation4], 1
    %16 = vsyncpa %s15, 0
    %17 = vsyncpa [#allocation7], 0
    %s18 = scalar_lea.sflag [#allocation7], 1
    %19 = vsyncpa %s18, 0
    %20 = vsyncpa [#allocation5], 0
    %s21 = scalar_lea.sflag [#allocation5], 1
    %22 = vsyncpa %s21, 0
    %23 = vsyncpa [#allocation11], 0
    %s24 = scalar_lea.sflag [#allocation11], 1
    %25 = vsyncpa %s24, 0
    loop: start=0, step=1, limit=6
    $region2: #{tpu_custom_call.1} parent=1 // loop_pre_header
      _
    $region3: #{tpu_custom_call.1} parent=1 // loop_header
      %s27 = sphi 0, %s31
      %p28 = scmp.ge.s32.totalorder %s27, 6
      %s37 = sphi 0, %s39
      %s40 = sphi 0, %s37
      %s41 = sphi 0, %s40
      %s57 = sphi 0, %s41
      %s63 = sphi 0, %s65
      %s66 = sphi 0, %s63
      %s67 = sphi 0, %s66
      %s83 = sphi 0, %s67
      %s87 = sphi 0, %s87
      %s89 = sphi 0, %s87
      %s90 = sphi 0, %s89
      %s104 = sphi 0, %s90
      %s108 = sphi 0, %s108
      %s110 = sphi 0, %s108
      %s111 = sphi 0, %s110
      %s125 = sphi 0, %s111
      %s129 = sphi 0, %s129
      %s131 = sphi 0, %s129
      %s132 = sphi 0, %s131
      %s146 = sphi 0, %s132
      %s150 = sphi 0, %s150
      %s152 = sphi 0, %s150
      %s153 = sphi 0, %s152
      %s167 = sphi 0, %s153
      %s173 = sphi 0, %s175
      %s176 = sphi 0, %s173
      %s177 = sphi 0, %s176
      %s193 = sphi 0, %s177
      %s199 = sphi 0, %s201
      %s202 = sphi 0, %s199
      %s203 = sphi 0, %s202
      %s219 = sphi 0, %s203
    $region4: #{tpu_custom_call.1} parent=1 // loop_header_branch
      %30 = sbr.rel (%p28) target = $region8
    $region5: #{tpu_custom_call.1} parent=1 // loop_body
      %s32 = ssub.s32 %s27, 1
      %s33 = ssub.s32 %s27, 2
      %s34 = sadd.s32 %s27, 1
      %s35 = ssub.s32 %s27, %s34
      %p36 = scmp.eq.s32.totalorder %s35, 0
      %s38 = sadd.s32 %s37, 1
      %s39 = scalar_select %p36, %s37, %s38
      %p42 = pneg %p36
      %p43 = scmp.eq.s32.totalorder %s27, 3
      %p44 = por %p42, %p43
      %p45 = scmp.ne.s32.totalorder %s37, %s40
      %p46 = scmp.eq.s32.totalorder %s27, 0
      %p47 = por %p45, %p46
      %p48 = scmp.ne.s32.totalorder %s37, %s40
      %p49 = scmp.eq.s32.totalorder %s32, 3
      %p50 = por %p48, %p49
      %p51 = scmp.ne.s32.totalorder %s40, %s41
      %p52 = scmp.eq.s32.totalorder %s32, 0
      %p53 = por %p51, %p52
      %p54 = scmp.ne.s32.totalorder %s40, %s41
      %p55 = scmp.eq.s32.totalorder %s33, 3
      %p56 = por %p54, %p55
      %p58 = scmp.ne.s32.totalorder %s41, %s57
      %p59 = scmp.eq.s32.totalorder %s33, 0
      %p60 = por %p58, %p59
      %s61 = ssub.s32 %s27, %s34
      %p62 = scmp.eq.s32.totalorder %s61, 0
      %s64 = sadd.s32 %s63, 1
      %s65 = scalar_select %p62, %s63, %s64
      %p68 = pneg %p62
      %p69 = scmp.eq.s32.totalorder %s27, 3
      %p70 = por %p68, %p69
      %p71 = scmp.ne.s32.totalorder %s63, %s66
      %p72 = scmp.eq.s32.totalorder %s27, 0
      %p73 = por %p71, %p72
      %p74 = scmp.ne.s32.totalorder %s63, %s66
      %p75 = scmp.eq.s32.totalorder %s32, 3
      %p76 = por %p74, %p75
      %p77 = scmp.ne.s32.totalorder %s66, %s67
      %p78 = scmp.eq.s32.totalorder %s32, 0
      %p79 = por %p77, %p78
      %p80 = scmp.ne.s32.totalorder %s66, %s67
      %p81 = scmp.eq.s32.totalorder %s33, 3
      %p82 = por %p80, %p81
      %p84 = scmp.ne.s32.totalorder %s67, %s83
      %p85 = scmp.eq.s32.totalorder %s33, 0
      %p86 = por %p84, %p85
      %s88 = sadd.s32 %s87, 1
      %p91 = scmp.eq.s32.totalorder %s27, 3
      %p92 = scmp.ne.s32.totalorder %s87, %s89
      %p93 = scmp.eq.s32.totalorder %s27, 0
      %p94 = por %p92, %p93
      %p95 = scmp.ne.s32.totalorder %s87, %s89
      %p96 = scmp.eq.s32.totalorder %s32, 3
      %p97 = por %p95, %p96
      %p98 = scmp.ne.s32.totalorder %s89, %s90
      %p99 = scmp.eq.s32.totalorder %s32, 0
      %p100 = por %p98, %p99
      %p101 = scmp.ne.s32.totalorder %s89, %s90
      %p102 = scmp.eq.s32.totalorder %s33, 3
      %p103 = por %p101, %p102
      %p105 = scmp.ne.s32.totalorder %s90, %s104
      %p106 = scmp.eq.s32.totalorder %s33, 0
      %p107 = por %p105, %p106
      %s109 = sadd.s32 %s108, 1
      %p112 = scmp.eq.s32.totalorder %s27, 3
      %p113 = scmp.ne.s32.totalorder %s108, %s110
      %p114 = scmp.eq.s32.totalorder %s27, 0
      %p115 = por %p113, %p114
      %p116 = scmp.ne.s32.totalorder %s108, %s110
      %p117 = scmp.eq.s32.totalorder %s32, 3
      %p118 = por %p116, %p117
      %p119 = scmp.ne.s32.totalorder %s110, %s111
      %p120 = scmp.eq.s32.totalorder %s32, 0
      %p121 = por %p119, %p120
      %p122 = scmp.ne.s32.totalorder %s110, %s111
      %p123 = scmp.eq.s32.totalorder %s33, 3
      %p124 = por %p122, %p123
      %p126 = scmp.ne.s32.totalorder %s111, %s125
      %p127 = scmp.eq.s32.totalorder %s33, 0
      %p128 = por %p126, %p127
      %s130 = sadd.s32 %s129, 1
      %p133 = scmp.eq.s32.totalorder %s27, 3
      %p134 = scmp.ne.s32.totalorder %s129, %s131
      %p135 = scmp.eq.s32.totalorder %s27, 0
      %p136 = por %p134, %p135
      %p137 = scmp.ne.s32.totalorder %s129, %s131
      %p138 = scmp.eq.s32.totalorder %s32, 3
      %p139 = por %p137, %p138
      %p140 = scmp.ne.s32.totalorder %s131, %s132
      %p141 = scmp.eq.s32.totalorder %s32, 0
      %p142 = por %p140, %p141
      %p143 = scmp.ne.s32.totalorder %s131, %s132
      %p144 = scmp.eq.s32.totalorder %s33, 3
      %p145 = por %p143, %p144
      %p147 = scmp.ne.s32.totalorder %s132, %s146
      %p148 = scmp.eq.s32.totalorder %s33, 0
      %p149 = por %p147, %p148
      %s151 = sadd.s32 %s150, 1
      %p154 = scmp.eq.s32.totalorder %s27, 3
      %p155 = scmp.ne.s32.totalorder %s150, %s152
      %p156 = scmp.eq.s32.totalorder %s27, 0
      %p157 = por %p155, %p156
      %p158 = scmp.ne.s32.totalorder %s150, %s152
      %p159 = scmp.eq.s32.totalorder %s32, 3
      %p160 = por %p158, %p159
      %p161 = scmp.ne.s32.totalorder %s152, %s153
      %p162 = scmp.eq.s32.totalorder %s32, 0
      %p163 = por %p161, %p162
      %p164 = scmp.ne.s32.totalorder %s152, %s153
      %p165 = scmp.eq.s32.totalorder %s33, 3
      %p166 = por %p164, %p165
      %p168 = scmp.ne.s32.totalorder %s153, %s167
      %p169 = scmp.eq.s32.totalorder %s33, 0
      %p170 = por %p168, %p169
      %s171 = ssub.s32 %s27, %s34
      %p172 = scmp.eq.s32.totalorder %s171, 0
      %s174 = sadd.s32 %s173, 1
      %s175 = scalar_select %p172, %s173, %s174
      %p178 = pneg %p172
      %p179 = scmp.eq.s32.totalorder %s27, 3
      %p180 = por %p178, %p179
      %p181 = scmp.ne.s32.totalorder %s173, %s176
      %p182 = scmp.eq.s32.totalorder %s27, 0
      %p183 = por %p181, %p182
      %p184 = scmp.ne.s32.totalorder %s173, %s176
      %p185 = scmp.eq.s32.totalorder %s32, 3
      %p186 = por %p184, %p185
      %p187 = scmp.ne.s32.totalorder %s176, %s177
      %p188 = scmp.eq.s32.totalorder %s32, 0
      %p189 = por %p187, %p188
      %p190 = scmp.ne.s32.totalorder %s176, %s177
      %p191 = scmp.eq.s32.totalorder %s33, 3
      %p192 = por %p190, %p191
      %p194 = scmp.ne.s32.totalorder %s177, %s193
      %p195 = scmp.eq.s32.totalorder %s33, 0
      %p196 = por %p194, %p195
      %s197 = ssub.s32 %s27, %s34
      %p198 = scmp.eq.s32.totalorder %s197, 0
      %s200 = sadd.s32 %s199, 1
      %s201 = scalar_select %p198, %s199, %s200
      %p204 = pneg %p198
      %p205 = scmp.eq.s32.totalorder %s27, 3
      %p206 = por %p204, %p205
      %p207 = scmp.ne.s32.totalorder %s199, %s202
      %p208 = scmp.eq.s32.totalorder %s27, 0
      %p209 = por %p207, %p208
      %p210 = scmp.ne.s32.totalorder %s199, %s202
      %p211 = scmp.eq.s32.totalorder %s32, 3
      %p212 = por %p210, %p211
      %p213 = scmp.ne.s32.totalorder %s202, %s203
      %p214 = scmp.eq.s32.totalorder %s32, 0
      %p215 = por %p213, %p214
      %p216 = scmp.ne.s32.totalorder %s202, %s203
      %p217 = scmp.eq.s32.totalorder %s33, 3
      %p218 = por %p216, %p217
      %p220 = scmp.ne.s32.totalorder %s203, %s219
      %p221 = scmp.eq.s32.totalorder %s33, 0
      %p222 = por %p220, %p221
      %p223 = scmp.le.s32.totalorder 1, %s27
      %p224 = scmp.lt.s32.totalorder %s27, 5
      %p225 = pnand %p223, %p224
      %p226 = pneg %p225
      // Predicated region
      $region9: #{tpu_custom_call.1} parent=5 // pred_check
        _
      $region10: #{tpu_custom_call.1} parent=5 // pred_check_branch
        %228 = sbr.rel (%p225) target = $region12
      $region11: #{tpu_custom_call.1} parent=5 // pred_region
        %s229 = ssub.s32 %s27, 1
        // Predicated region
        $region13: #{tpu_custom_call.1} parent=11 // pred_check
          %p230 = pneg %p100
        $region14: #{tpu_custom_call.1} parent=11 // pred_check_branch
          %232 = sbr.rel (%p230) target = $region16
        $region15: #{tpu_custom_call.1} parent=11 // pred_region
          %s234 = ssub.s32 2048, 2048
          %235 = vsyncadd [#allocation7], %s234
          %s236 = sshll.u32 [#allocation8], 4
          %s237 = int_to_ptr.vmem [resolvable:$true] %s236
          %242 = dma.hbm_to_vmem [thread:$0]  %s2, 2048, %s237, [#allocation7], 128, 128, 8
        $region16: #{tpu_custom_call.1} parent=11 // pred_fallthru
          _
        // Predicated region
        $region17: #{tpu_custom_call.1} parent=11 // pred_check
          %p243 = pneg %p121
        $region18: #{tpu_custom_call.1} parent=11 // pred_check_branch
          %245 = sbr.rel (%p243) target = $region20
        $region19: #{tpu_custom_call.1} parent=11 // pred_region
          _
        $region20: #{tpu_custom_call.1} parent=11 // pred_fallthru
          _
        // Predicated region
        $region21: #{tpu_custom_call.1} parent=11 // pred_check
          %p246 = pneg %p142
        $region22: #{tpu_custom_call.1} parent=11 // pred_check_branch
          %248 = sbr.rel (%p246) target = $region24
        $region23: #{tpu_custom_call.1} parent=11 // pred_region
          _
        $region24: #{tpu_custom_call.1} parent=11 // pred_fallthru
          _
        // Predicated region
        $region25: #{tpu_custom_call.1} parent=11 // pred_check
          %p249 = pneg %p163
        $region26: #{tpu_custom_call.1} parent=11 // pred_check_branch
          %251 = sbr.rel (%p249) target = $region28
        $region27: #{tpu_custom_call.1} parent=11 // pred_region
          _
        $region28: #{tpu_custom_call.1} parent=11 // pred_fallthru
          _
      $region12: #{tpu_custom_call.1} parent=5 // pred_fallthru
        _
      %p252 = scmp.lt.s32.totalorder %s27, 4
      // Predicated region
      $region29: #{tpu_custom_call.1} parent=5 // pred_check
        %p253 = pneg %p252
      $region30: #{tpu_custom_call.1} parent=5 // pred_check_branch
        %255 = sbr.rel (%p253) target = $region32
      $region31: #{tpu_custom_call.1} parent=5 // pred_region
        // Predicated region
        $region33: #{tpu_custom_call.1} parent=31 // pred_check
          %p256 = pneg %p47
        $region34: #{tpu_custom_call.1} parent=31 // pred_check_branch
          %258 = sbr.rel (%p256) target = $region36
        $region35: #{tpu_custom_call.1} parent=31 // pred_region
          %s259 = sand.u32 %s37, 1
          %s260 = scalar_lea.sflag [#allocation4], %s259
          %s261 = sand.u32 %s37, 1
          %s262 = smul.addr %s261, 256
          %s263 = scalar_lea.vmem [#allocation3], %s262
          %s264 = smul.u32 32, %s27
          %s266 = ssub.s32 4096, 4096
          %267 = vsyncadd %s260, %s266
          %s268 = smul.addr %s264, 128
          %s269 = scalar_lea.hbm %s0, %s268
          %s270 = sshll.u32 %s263, 4
          %s271 = int_to_ptr.vmem [resolvable:$true] %s270
          %276 = dma.hbm_to_vmem [thread:$0]  %s269, 4096, %s271, %s260, 128, 128, 8
        $region36: #{tpu_custom_call.1} parent=31 // pred_fallthru
          _
        // Predicated region
        $region37: #{tpu_custom_call.1} parent=31 // pred_check
          %p277 = pneg %p73
        $region38: #{tpu_custom_call.1} parent=31 // pred_check_branch
          %279 = sbr.rel (%p277) target = $region40
        $region39: #{tpu_custom_call.1} parent=31 // pred_region
          %s280 = sand.u32 %s27, 1
          %s281 = scalar_lea.sflag [#allocation7], %s280
          %s282 = sand.u32 %s63, 1
          %s283 = smul.addr %s282, 2
          %s284 = scalar_lea.vmem [#allocation6], %s283
          %s286 = ssub.s32 32, 32
          %287 = vsyncadd %s281, %s286
          %s288 = smul.addr %s27, 2
          %s289 = smul.addr %s288, 16
          %s290 = scalar_lea.hbm %s1, %s289
          %s292 = sshll.u32 %s284, 4
          %s293 = int_to_ptr.vmem [resolvable:$true] %s292
          %295 = dma.hbm_to_vmem [thread:$0]  %s290, 32, %s293, %s281
        $region40: #{tpu_custom_call.1} parent=31 // pred_fallthru
          _
      $region32: #{tpu_custom_call.1} parent=5 // pred_fallthru
        _
      %p296 = scmp.le.s32.totalorder 1, %s27
      %p297 = scmp.lt.s32.totalorder %s27, 5
      %p298 = pnand %p296, %p297
      %p299 = pneg %p298
      // Predicated region
      $region41: #{tpu_custom_call.1} parent=5 // pred_check
        _
      $region42: #{tpu_custom_call.1} parent=5 // pred_check_branch
        %301 = sbr.rel (%p298) target = $region44
      $region43: #{tpu_custom_call.1} parent=5 // pred_region
        %s302 = ssub.s32 %s27, 1
        %s303 = sand.u32 %s40, 1
        %s304 = scalar_lea.sflag [#allocation4], %s303
        %s305 = sand.u32 %s40, 1
        %s306 = smul.addr %s305, 256
        %s307 = scalar_lea.vmem [#allocation3], %s306
        // Predicated region
        $region45: #{tpu_custom_call.1} parent=43 // pred_check
          %p308 = pneg %p53
        $region46: #{tpu_custom_call.1} parent=43 // pred_check_branch
          %310 = sbr.rel (%p308) target = $region48
        $region47: #{tpu_custom_call.1} parent=43 // pred_region
          %311 = dma.done %s304, 4096
        $region48: #{tpu_custom_call.1} parent=43 // pred_fallthru
          _
        %s312 = sand.u32 %s32, 1
        %s313 = scalar_lea.sflag [#allocation7], %s312
        %s314 = sand.u32 %s66, 1
        %s315 = smul.addr %s314, 2
        %s316 = scalar_lea.vmem [#allocation6], %s315
        // Predicated region
        $region49: #{tpu_custom_call.1} parent=43 // pred_check
          %p317 = pneg %p79
        $region50: #{tpu_custom_call.1} parent=43 // pred_check_branch
          %319 = sbr.rel (%p317) target = $region52
        $region51: #{tpu_custom_call.1} parent=43 // pred_region
          %320 = dma.done %s313, 32
        $region52: #{tpu_custom_call.1} parent=43 // pred_fallthru
          _
        // Predicated region
        $region53: #{tpu_custom_call.1} parent=43 // pred_check
          %p321 = pneg %p100
        $region54: #{tpu_custom_call.1} parent=43 // pred_check_branch
          %323 = sbr.rel (%p321) target = $region56
        $region55: #{tpu_custom_call.1} parent=43 // pred_region
          %324 = dma.done [#allocation7], 2048
        $region56: #{tpu_custom_call.1} parent=43 // pred_fallthru
          _
        %s325 = sand.u32 %s40, 1
        %s326 = scalar_lea.sflag [#allocation4], %s325
        %s327 = sand.u32 %s40, 1
        %s328 = smul.addr %s327, 256
        %s329 = scalar_lea.vmem [#allocation3], %s328
        %p330 = pneg %p53
        %p331 = pneg %p50
        %s332 = sand.u32 %s32, 1
        %s333 = scalar_lea.sflag [#allocation7], %s332
        %s334 = sand.u32 %s66, 1
        %s335 = smul.addr %s334, 2
        %s336 = scalar_lea.vmem [#allocation6], %s335
        %p337 = pneg %p79
        %p338 = pneg %p76
        %p339 = pneg %p100
        %p340 = pneg %p97
        %p341 = pneg %p121
        %p342 = pneg %p118
        %p343 = pneg %p142
        %p344 = pneg %p139
        %p345 = pneg %p163
        %p346 = pneg %p160
        %p347 = pneg %p189
        %p348 = pneg %p186
        %s349 = sand.u32 %s176, 1
        %s350 = scalar_lea.sflag [#allocation5], %s349
        %s351 = sand.u32 %s176, 1
        %s352 = smul.addr %s351, 16
        %s353 = scalar_lea.vmem [#allocation9], %s352
        %p354 = pneg %p215
        %p355 = pneg %p212
        %s356 = sand.u32 %s202, 1
        %s357 = scalar_lea.sflag [#allocation11], %s356
        %s358 = sand.u32 %s202, 1
        %s359 = smul.addr %s358, 2
        %s360 = scalar_lea.vmem [#allocation10], %s359
        %s361 = smul.u32 32, %s32
        %s362 = smul.u32 2, %s32
        %v363 = vld [vmem:[%s307] sm:$0xff]
        %v364 = vld [vmem:[%s307 + $0x8] sm:$0xff]
        %v365 = vld [vmem:[%s307 + $0x10] sm:$0xff]
        %v366 = vld [vmem:[%s307 + $0x18] sm:$0xff]
        %v367 = vld [vmem:[%s307 + $0x20] sm:$0xff]
        %v368 = vld [vmem:[%s307 + $0x28] sm:$0xff]
        %v369 = vld [vmem:[%s307 + $0x30] sm:$0xff]
        %v370 = vld [vmem:[%s307 + $0x38] sm:$0xff]
        %v371 = vld [vmem:[%s307 + $0x40] sm:$0xff]
        %v372 = vld [vmem:[%s307 + $0x48] sm:$0xff]
        %v373 = vld [vmem:[%s307 + $0x50] sm:$0xff]
        %v374 = vld [vmem:[%s307 + $0x58] sm:$0xff]
        %v375 = vld [vmem:[%s307 + $0x60] sm:$0xff]
        %v376 = vld [vmem:[%s307 + $0x68] sm:$0xff]
        %v377 = vld [vmem:[%s307 + $0x70] sm:$0xff]
        %v378 = vld [vmem:[%s307 + $0x78] sm:$0xff]
        %v379 = vld [vmem:[%s307 + $0x80] sm:$0xff]
        %v380 = vld [vmem:[%s307 + $0x88] sm:$0xff]
        %v381 = vld [vmem:[%s307 + $0x90] sm:$0xff]
        %v382 = vld [vmem:[%s307 + $0x98] sm:$0xff]
        %v383 = vld [vmem:[%s307 + $0xa0] sm:$0xff]
        %v384 = vld [vmem:[%s307 + $0xa8] sm:$0xff]
        %v385 = vld [vmem:[%s307 + $0xb0] sm:$0xff]
        %v386 = vld [vmem:[%s307 + $0xb8] sm:$0xff]
        %v387 = vld [vmem:[%s307 + $0xc0] sm:$0xff]
        %v388 = vld [vmem:[%s307 + $0xc8] sm:$0xff]
        %v389 = vld [vmem:[%s307 + $0xd0] sm:$0xff]
        %v390 = vld [vmem:[%s307 + $0xd8] sm:$0xff]
        %v391 = vld [vmem:[%s307 + $0xe0] sm:$0xff]
        %v392 = vld [vmem:[%s307 + $0xe8] sm:$0xff]
        %v393 = vld [vmem:[%s307 + $0xf0] sm:$0xff]
        %v394 = vld [vmem:[%s307 + $0xf8] sm:$0xff]
        %v395 = vld [vmem:[#allocation8] sm:$0xff]
        %v396 = vld [vmem:[#allocation8 + $0x8] sm:$0xff]
        %v397 = vld [vmem:[#allocation8 + $0x10] sm:$0xff]
        %v398 = vld [vmem:[#allocation8 + $0x18] sm:$0xff]
        %v399 = vld [vmem:[#allocation8 + $0x20] sm:$0xff]
        %v400 = vld [vmem:[#allocation8 + $0x28] sm:$0xff]
        %v401 = vld [vmem:[#allocation8 + $0x30] sm:$0xff]
        %v402 = vld [vmem:[#allocation8 + $0x38] sm:$0xff]
        %v403 = vld [vmem:[#allocation8 + $0x40] sm:$0xff]
        %v404 = vld [vmem:[#allocation8 + $0x48] sm:$0xff]
        %v405 = vld [vmem:[#allocation8 + $0x50] sm:$0xff]
        %v406 = vld [vmem:[#allocation8 + $0x58] sm:$0xff]
        %v407 = vld [vmem:[#allocation8 + $0x60] sm:$0xff]
        %v408 = vld [vmem:[#allocation8 + $0x68] sm:$0xff]
        %v409 = vld [vmem:[#allocation8 + $0x70] sm:$0xff]
        %v410 = vld [vmem:[#allocation8 + $0x78] sm:$0xff]
        %v411 = vld [vmem:[%s3] sm:$0x1]
        %v413 = vlaneseq
        %v414 = vshrl.u32 %v413, 7
        %v415 = vsub.s32 0, %v414
        %v416 = vrot.slane %v411, %v415
        %418 = vmatprep.subr.mxu0 0.0
        %419 = vmatpush1.msra.mxu0 %v395
        %420 = vmatprep.subr.mxu0 0.0
        %421 = vmatpush1.msra.mxu0 %v396
        %422 = vmatprep.subr.mxu0 0.0
        %423 = vmatpush1.msra.mxu0 %v397
        %424 = vmatprep.subr.mxu0 0.0
        %425 = vmatpush1.msra.mxu0 %v398
        %426 = vmatprep.subr.mxu0 0.0
        %427 = vmatpush1.msra.mxu0 %v399
        %428 = vmatprep.subr.mxu0 0.0
        %429 = vmatpush1.msra.mxu0 %v400
        %430 = vmatprep.subr.mxu0 0.0
        %431 = vmatpush1.msra.mxu0 %v401
        %432 = vmatprep.subr.mxu0 0.0
        %433 = vmatpush1.msra.mxu0 %v402
        %434 = vmatprep.subr.mxu0 0.0
        %435 = vmatpush1.msra.mxu0 %v403
        %436 = vmatprep.subr.mxu0 0.0
        %437 = vmatpush1.msra.mxu0 %v404
        %438 = vmatprep.subr.mxu0 0.0
        %439 = vmatpush1.msra.mxu0 %v405
        %440 = vmatprep.subr.mxu0 0.0
        %441 = vmatpush1.msra.mxu0 %v406
        %442 = vmatprep.subr.mxu0 0.0
        %443 = vmatpush1.msra.mxu0 %v407
        %444 = vmatprep.subr.mxu0 0.0
        %445 = vmatpush1.msra.mxu0 %v408
        %446 = vmatprep.subr.mxu0 0.0
        %447 = vmatpush1.msra.mxu0 %v409
        %448 = vmatprep.subr.mxu0 0.0
        %449 = vmatpush1.msra.mxu0 %v410
        %450 = vmatprep.subr.mxu0 0.0
        %451 = vmatpush1.msra.mxu0 0.0
        %452 = vmatprep.subr.mxu0 0.0
        %453 = vmatpush1.msra.mxu0 0.0
        %454 = vmatprep.subr.mxu0 0.0
        %455 = vmatpush1.msra.mxu0 0.0
        %456 = vmatprep.subr.mxu0 0.0
        %457 = vmatpush1.msra.mxu0 0.0
        %458 = vmatprep.subr.mxu0 0.0
        %459 = vmatpush1.msra.mxu0 0.0
        %460 = vmatprep.subr.mxu0 0.0
        %461 = vmatpush1.msra.mxu0 0.0
        %462 = vmatprep.subr.mxu0 0.0
        %463 = vmatpush1.msra.mxu0 0.0
        %464 = vmatprep.subr.mxu0 0.0
        %465 = vmatpush1.msra.mxu0 0.0
        %466 = vmatprep.subr.mxu0 0.0
        %467 = vmatpush1.msra.mxu0 0.0
        %468 = vmatprep.subr.mxu0 0.0
        %469 = vmatpush1.msra.mxu0 0.0
        %470 = vmatprep.subr.mxu0 0.0
        %471 = vmatpush1.msra.mxu0 0.0
        %472 = vmatprep.subr.mxu0 0.0
        %473 = vmatpush1.msra.mxu0 0.0
        %474 = vmatprep.subr.mxu0 0.0
        %475 = vmatpush1.msra.mxu0 0.0
        %476 = vmatprep.subr.mxu0 0.0
        %477 = vmatpush1.msra.mxu0 0.0
        %478 = vmatprep.subr.mxu0 0.0
        %479 = vmatpush1.msra.mxu0 0.0
        %480 = vmatprep.subr.mxu0 0.0
        %481 = vmatpush1.msra.mxu0 0.0
        %482 = vmatprep.mubr.f32.mxu0 0.0
        %483 = vmatmul.mubr.f32.gmra.mrb[0].mxu0 %v363
        %v484 = vpop.f32.mrb[0].mxu0
        %v485 = vadd.f32 %v416, %v484
        %v486 = vpop.f32.mrb[0].mxu0
        %487 = vmatprep.mubr.f32.mxu0 0.0
        %488 = vmatmul.mubr.f32.gmra.mrb[0].mxu0 %v364
        %v489 = vpop.f32.mrb[0].mxu0
        %v490 = vadd.f32 %v416, %v489
        %v491 = vpop.f32.mrb[0].mxu0
        %492 = vmatprep.mubr.f32.mxu0 0.0
        %493 = vmatmul.mubr.f32.gmra.mrb[0].mxu0 %v365
        %v494 = vpop.f32.mrb[0].mxu0
        %v495 = vadd.f32 %v416, %v494
        %v496 = vpop.f32.mrb[0].mxu0
        %497 = vmatprep.mubr.f32.mxu0 0.0
        %498 = vmatmul.mubr.f32.gmra.mrb[0].mxu0 %v366
        %v499 = vpop.f32.mrb[0].mxu0
        %v500 = vadd.f32 %v416, %v499
        %v501 = vpop.f32.mrb[0].mxu0
        %502 = vmatprep.mubr.f32.mxu0 0.0
        %503 = vmatmul.mubr.f32.gmra.mrb[0].mxu0 %v367
        %v504 = vpop.f32.mrb[0].mxu0
        %v505 = vadd.f32 %v416, %v504
        %v506 = vpop.f32.mrb[0].mxu0
        %507 = vmatprep.mubr.f32.mxu0 0.0
        %508 = vmatmul.mubr.f32.gmra.mrb[0].mxu0 %v368
        %v509 = vpop.f32.mrb[0].mxu0
        %v510 = vadd.f32 %v416, %v509
        %v511 = vpop.f32.mrb[0].mxu0
        %512 = vmatprep.mubr.f32.mxu0 0.0
        %513 = vmatmul.mubr.f32.gmra.mrb[0].mxu0 %v369
        %v514 = vpop.f32.mrb[0].mxu0
        %v515 = vadd.f32 %v416, %v514
        %v516 = vpop.f32.mrb[0].mxu0
        %517 = vmatprep.mubr.f32.mxu0 0.0
        %518 = vmatmul.mubr.f32.gmra.mrb[0].mxu0 %v370
        %v519 = vpop.f32.mrb[0].mxu0
        %v520 = vadd.f32 %v416, %v519
        %v521 = vpop.f32.mrb[0].mxu0
        %522 = vmatprep.mubr.f32.mxu0 0.0
        %523 = vmatmul.mubr.f32.gmra.mrb[0].mxu0 %v371
        %v524 = vpop.f32.mrb[0].mxu0
        %v525 = vadd.f32 %v416, %v524
        %v526 = vpop.f32.mrb[0].mxu0
        %527 = vmatprep.mubr.f32.mxu0 0.0
        %528 = vmatmul.mubr.f32.gmra.mrb[0].mxu0 %v372
        %v529 = vpop.f32.mrb[0].mxu0
        %v530 = vadd.f32 %v416, %v529
        %v531 = vpop.f32.mrb[0].mxu0
        %532 = vmatprep.mubr.f32.mxu0 0.0
        %533 = vmatmul.mubr.f32.gmra.mrb[0].mxu0 %v373
        %v534 = vpop.f32.mrb[0].mxu0
        %v535 = vadd.f32 %v416, %v534
        %v536 = vpop.f32.mrb[0].mxu0
        %537 = vmatprep.mubr.f32.mxu0 0.0
        %538 = vmatmul.mubr.f32.gmra.mrb[0].mxu0 %v374
        %v539 = vpop.f32.mrb[0].mxu0
        %v540 = vadd.f32 %v416, %v539
        %v541 = vpop.f32.mrb[0].mxu0
        %542 = vmatprep.mubr.f32.mxu0 0.0
        %543 = vmatmul.mubr.f32.gmra.mrb[0].mxu0 %v375
        %v544 = vpop.f32.mrb[0].mxu0
        %v545 = vadd.f32 %v416, %v544
        %v546 = vpop.f32.mrb[0].mxu0
        %547 = vmatprep.mubr.f32.mxu0 0.0
        %548 = vmatmul.mubr.f32.gmra.mrb[0].mxu0 %v376
        %v549 = vpop.f32.mrb[0].mxu0
        %v550 = vadd.f32 %v416, %v549
        %v551 = vpop.f32.mrb[0].mxu0
        %552 = vmatprep.mubr.f32.mxu0 0.0
        %553 = vmatmul.mubr.f32.gmra.mrb[0].mxu0 %v377
        %v554 = vpop.f32.mrb[0].mxu0
        %v555 = vadd.f32 %v416, %v554
        %v556 = vpop.f32.mrb[0].mxu0
        %557 = vmatprep.mubr.f32.mxu0 0.0
        %558 = vmatmul.mubr.f32.gmra.mrb[0].mxu0 %v378
        %v559 = vpop.f32.mrb[0].mxu0
        %v560 = vadd.f32 %v416, %v559
        %v561 = vpop.f32.mrb[0].mxu0
        %562 = vmatprep.mubr.f32.mxu0 0.0
        %563 = vmatmul.mubr.f32.gmra.mrb[0].mxu0 %v379
        %v564 = vpop.f32.mrb[0].mxu0
        %v565 = vadd.f32 %v416, %v564
        %v566 = vpop.f32.mrb[0].mxu0
        %567 = vmatprep.mubr.f32.mxu0 0.0
        %568 = vmatmul.mubr.f32.gmra.mrb[0].mxu0 %v380
        %v569 = vpop.f32.mrb[0].mxu0
        %v570 = vadd.f32 %v416, %v569
        %v571 = vpop.f32.mrb[0].mxu0
        %572 = vmatprep.mubr.f32.mxu0 0.0
        %573 = vmatmul.mubr.f32.gmra.mrb[0].mxu0 %v381
        %v574 = vpop.f32.mrb[0].mxu0
        %v575 = vadd.f32 %v416, %v574
        %v576 = vpop.f32.mrb[0].mxu0
        %577 = vmatprep.mubr.f32.mxu0 0.0
        %578 = vmatmul.mubr.f32.gmra.mrb[0].mxu0 %v382
        %v579 = vpop.f32.mrb[0].mxu0
        %v580 = vadd.f32 %v416, %v579
        %v581 = vpop.f32.mrb[0].mxu0
        %582 = vmatprep.mubr.f32.mxu0 0.0
        %583 = vmatmul.mubr.f32.gmra.mrb[0].mxu0 %v383
        %v584 = vpop.f32.mrb[0].mxu0
        %v585 = vadd.f32 %v416, %v584
        %v586 = vpop.f32.mrb[0].mxu0
        %587 = vmatprep.mubr.f32.mxu0 0.0
        %588 = vmatmul.mubr.f32.gmra.mrb[0].mxu0 %v384
        %v589 = vpop.f32.mrb[0].mxu0
        %v590 = vadd.f32 %v416, %v589
        %v591 = vpop.f32.mrb[0].mxu0
        %592 = vmatprep.mubr.f32.mxu0 0.0
        %593 = vmatmul.mubr.f32.gmra.mrb[0].mxu0 %v385
        %v594 = vpop.f32.mrb[0].mxu0
        %v595 = vadd.f32 %v416, %v594
        %v596 = vpop.f32.mrb[0].mxu0
        %597 = vmatprep.mubr.f32.mxu0 0.0
        %598 = vmatmul.mubr.f32.gmra.mrb[0].mxu0 %v386
        %v599 = vpop.f32.mrb[0].mxu0
        %v600 = vadd.f32 %v416, %v599
        %v601 = vpop.f32.mrb[0].mxu0
        %602 = vmatprep.mubr.f32.mxu0 0.0
        %603 = vmatmul.mubr.f32.gmra.mrb[0].mxu0 %v387
        %v604 = vpop.f32.mrb[0].mxu0
        %v605 = vadd.f32 %v416, %v604
        %v606 = vpop.f32.mrb[0].mxu0
        %607 = vmatprep.mubr.f32.mxu0 0.0
        %608 = vmatmul.mubr.f32.gmra.mrb[0].mxu0 %v388
        %v609 = vpop.f32.mrb[0].mxu0
        %v610 = vadd.f32 %v416, %v609
        %v611 = vpop.f32.mrb[0].mxu0
        %612 = vmatprep.mubr.f32.mxu0 0.0
        %613 = vmatmul.mubr.f32.gmra.mrb[0].mxu0 %v389
        %v614 = vpop.f32.mrb[0].mxu0
        %v615 = vadd.f32 %v416, %v614
        %v616 = vpop.f32.mrb[0].mxu0
        %617 = vmatprep.mubr.f32.mxu0 0.0
        %618 = vmatmul.mubr.f32.gmra.mrb[0].mxu0 %v390
        %v619 = vpop.f32.mrb[0].mxu0
        %v620 = vadd.f32 %v416, %v619
        %v621 = vpop.f32.mrb[0].mxu0
        %622 = vmatprep.mubr.f32.mxu0 0.0
        %623 = vmatmul.mubr.f32.gmra.mrb[0].mxu0 %v391
        %v624 = vpop.f32.mrb[0].mxu0
        %v625 = vadd.f32 %v416, %v624
        %v626 = vpop.f32.mrb[0].mxu0
        %627 = vmatprep.mubr.f32.mxu0 0.0
        %628 = vmatmul.mubr.f32.gmra.mrb[0].mxu0 %v392
        %v629 = vpop.f32.mrb[0].mxu0
        %v630 = vadd.f32 %v416, %v629
        %v631 = vpop.f32.mrb[0].mxu0
        %632 = vmatprep.mubr.f32.mxu0 0.0
        %633 = vmatmul.mubr.f32.gmra.mrb[0].mxu0 %v393
        %v634 = vpop.f32.mrb[0].mxu0
        %v635 = vadd.f32 %v416, %v634
        %v636 = vpop.f32.mrb[0].mxu0
        %637 = vmatprep.mubr.f32.mxu0 0.0
        %638 = vmatmul.mubr.f32.gmra.mrb[0].mxu0 %v394
        %v639 = vpop.f32.mrb[0].mxu0
        %v640 = vadd.f32 %v416, %v639
        %v641 = vpop.f32.mrb[0].mxu0
        %642 = vdwg.mxu0
        %v643 = vtanh.pop %v485
        %v644 = vtanh.pop %v490
        %v645 = vtanh.pop %v495
        %v646 = vtanh.pop %v500
        %v647 = vtanh.pop %v505
        %v648 = vtanh.pop %v510
        %v649 = vtanh.pop %v515
        %v650 = vtanh.pop %v520
        %v651 = vtanh.pop %v525
        %v652 = vtanh.pop %v530
        %v653 = vtanh.pop %v535
        %v654 = vtanh.pop %v540
        %v655 = vtanh.pop %v545
        %v656 = vtanh.pop %v550
        %v657 = vtanh.pop %v555
        %v658 = vtanh.pop %v560
        %v659 = vtanh.pop %v565
        %v660 = vtanh.pop %v570
        %v661 = vtanh.pop %v575
        %v662 = vtanh.pop %v580
        %v663 = vtanh.pop %v585
        %v664 = vtanh.pop %v590
        %v665 = vtanh.pop %v595
        %v666 = vtanh.pop %v600
        %v667 = vtanh.pop %v605
        %v668 = vtanh.pop %v610
        %v669 = vtanh.pop %v615
        %v670 = vtanh.pop %v620
        %v671 = vtanh.pop %v625
        %v672 = vtanh.pop %v630
        %v673 = vtanh.pop %v635
        %v674 = vtanh.pop %v640
        %v675 = vld [vmem:[%s4] sm:$0x1]
        %s676 = sld [smem:[#allocation2]]
        %v677 = vstv %s676
        %678 = vmatprep.subr.mxu0 0.0
        %679 = vmatpush1.xpose.msra.mxu0 %v643
        %680 = vmatprep.subr.mxu0 0.0
        %681 = vmatpush1.xpose.msra.mxu0 %v644
        %682 = vmatprep.subr.mxu0 0.0
        %683 = vmatpush1.xpose.msra.mxu0 %v645
        %684 = vmatprep.subr.mxu0 0.0
        %685 = vmatpush1.xpose.msra.mxu0 %v646
        %686 = vmatprep.subr.mxu0 0.0
        %687 = vmatpush1.xpose.msra.mxu0 %v647
        %688 = vmatprep.subr.mxu0 0.0
        %689 = vmatpush1.xpose.msra.mxu0 %v648
        %690 = vmatprep.subr.mxu0 0.0
        %691 = vmatpush1.xpose.msra.mxu0 %v649
        %692 = vmatprep.subr.mxu0 0.0
        %693 = vmatpush1.xpose.msra.mxu0 %v650
        %694 = vmatprep.subr.mxu0 0.0
        %695 = vmatpush1.xpose.msra.mxu0 %v651
        %696 = vmatprep.subr.mxu0 0.0
        %697 = vmatpush1.xpose.msra.mxu0 %v652
        %698 = vmatprep.subr.mxu0 0.0
        %699 = vmatpush1.xpose.msra.mxu0 %v653
        %700 = vmatprep.subr.mxu0 0.0
        %701 = vmatpush1.xpose.msra.mxu0 %v654
        %702 = vmatprep.subr.mxu0 0.0
        %703 = vmatpush1.xpose.msra.mxu0 %v655
        %704 = vmatprep.subr.mxu0 0.0
        %705 = vmatpush1.xpose.msra.mxu0 %v656
        %706 = vmatprep.subr.mxu0 0.0
        %707 = vmatpush1.xpose.msra.mxu0 %v657
        %708 = vmatprep.subr.mxu0 0.0
        %709 = vmatpush1.xpose.msra.mxu0 %v658
        %710 = vmatprep.subr.mxu0 0.0
        %711 = vmatpush1.xpose.msra.mxu0 %v659
        %712 = vmatprep.subr.mxu0 0.0
        %713 = vmatpush1.xpose.msra.mxu0 %v660
        %714 = vmatprep.subr.mxu0 0.0
        %715 = vmatpush1.xpose.msra.mxu0 %v661
        %716 = vmatprep.subr.mxu0 0.0
        %717 = vmatpush1.xpose.msra.mxu0 %v662
        %718 = vmatprep.subr.mxu0 0.0
        %719 = vmatpush1.xpose.msra.mxu0 %v663
        %720 = vmatprep.subr.mxu0 0.0
        %721 = vmatpush1.xpose.msra.mxu0 %v664
        %722 = vmatprep.subr.mxu0 0.0
        %723 = vmatpush1.xpose.msra.mxu0 %v665
        %724 = vmatprep.subr.mxu0 0.0
        %725 = vmatpush1.xpose.msra.mxu0 %v666
        %726 = vmatprep.subr.mxu0 0.0
        %727 = vmatpush1.xpose.msra.mxu0 %v667
        %728 = vmatprep.subr.mxu0 0.0
        %729 = vmatpush1.xpose.msra.mxu0 %v668
        %730 = vmatprep.subr.mxu0 0.0
        %731 = vmatpush1.xpose.msra.mxu0 %v669
        %732 = vmatprep.subr.mxu0 0.0
        %733 = vmatpush1.xpose.msra.mxu0 %v670
        %734 = vmatprep.subr.mxu0 0.0
        %735 = vmatpush1.xpose.msra.mxu0 %v671
        %736 = vmatprep.subr.mxu0 0.0
        %737 = vmatpush1.xpose.msra.mxu0 %v672
        %738 = vmatprep.subr.mxu0 0.0
        %739 = vmatpush1.xpose.msra.mxu0 %v673
        %740 = vmatprep.subr.mxu0 0.0
        %741 = vmatpush1.xpose.msra.mxu0 %v674
        %742 = vmatprep.mubr.f32.mxu0 0.0
        %743 = vmatmul.mubr.f32.gmra.mrb[0].mxu0 %v675
        %v744 = vpop.f32.mrb[0].mxu0
        %v745 = vadd.f32 %v677, %v744
        %v746 = vpop.f32.mrb[0].mxu0
        %v747 = vadd.f32 %v677, %v746
        %748 = vdwg.mxu0
        %v749 = vmul.f32 %v745, 1.442695
        %v750 = vpow.pop %v749
        %v751 = vmul.f32 %v747, 1.442695
        %v752 = vpow.pop %v751
        %v753 = vld [vmem:[%s316] sm:$0x3]
        %v755 = vlaneseq
        %v756 = vshrl.u32 %v755, 7
        %v757 = vsub.s32 0, %v756
        %v758 = vrot.slane %v753, %v757
        %v759 = vlaneseq
        %v760 = vshrl.u32 %v759, 7
        %v761 = vsub.s32 1, %v760
        %v762 = vrot.slane %v753, %v761
        %v765 = vmul.f32 %v750, %v758
        %v766 = vmul.f32 %v752, %v762
        %v767 = vlaneseq
        %v768 = vand.u32 %v767, 127
        %v769 = vadd.s32 %v768, 128
        %v770 = vlaneseq
        %v771 = vshrl.u32 %v770, 7
        %v772 = vadd.s32 %v771, 8
        %v773 = vmul.u32 %v771, 16
        %v774 = vmul.u32 %v772, 16
        %vm775 = vcmp.ge.s32.totalorder %v768, %v773
        %vm776 = vcmp.ge.s32.totalorder %v769, %v773
        %vm777 = vcmp.ge.s32.totalorder %v768, %v774
        %vm778 = vcmp.ge.s32.totalorder %v769, %v774
        %v779 = vadd.s32 %v773, 16
        %v780 = vadd.s32 %v774, 16
        %vm781 = vcmp.lt.s32.totalorder %v768, %v779
        %vm782 = vcmp.lt.s32.totalorder %v769, %v779
        %vm783 = vcmp.lt.s32.totalorder %v768, %v780
        %vm784 = vcmp.lt.s32.totalorder %v769, %v780
        %vm785 = vmand %vm775, %vm781
        %vm786 = vmand %vm776, %vm782
        %vm787 = vmand %vm777, %vm783
        %vm788 = vmand %vm778, %vm784
        %v789 = vsel %vm785, 1, 0
        %v790 = vsel %vm786, 1, 0
        %v791 = vsel %vm787, 1, 0
        %v792 = vsel %vm788, 1, 0
        %v793 = vcvt.s32.f32 %v789
        %v794 = vcvt.s32.f32 %v790
        %v795 = vcvt.s32.f32 %v791
        %v796 = vcvt.s32.f32 %v792
        %v797 = vadd.s32 %v771, 16
        %v798 = vadd.s32 %v771, 24
        %v799 = vadd.s32 %v771, 32
        %v800 = vadd.s32 %v771, 40
        %v801 = vadd.s32 %v771, 48
        %v802 = vadd.s32 %v771, 56
        %v803 = vadd.s32 %v771, 64
        %v804 = vadd.s32 %v771, 72
        %v805 = vadd.s32 %v771, 80
        %v806 = vadd.s32 %v771, 88
        %v807 = vadd.s32 %v771, 96
        %v808 = vadd.s32 %v771, 104
        %v809 = vadd.s32 %v771, 112
        %v810 = vadd.s32 %v771, 120
        %v811 = vadd.s32 %v771, 128
        %v812 = vadd.s32 %v771, 136
        %v813 = vadd.s32 %v771, 144
        %v814 = vadd.s32 %v771, 152
        %v815 = vadd.s32 %v771, 160
        %v816 = vadd.s32 %v771, 168
        %v817 = vadd.s32 %v771, 176
        %v818 = vadd.s32 %v771, 184
        %v819 = vadd.s32 %v771, 192
        %v820 = vadd.s32 %v771, 200
        %v821 = vadd.s32 %v771, 208
        %v822 = vadd.s32 %v771, 216
        %v823 = vadd.s32 %v771, 224
        %v824 = vadd.s32 %v771, 232
        %v825 = vadd.s32 %v771, 240
        %v826 = vadd.s32 %v771, 248
        %v827 = vmul.u32 %v768, 16
        %vm828 = vcmp.ge.s32.totalorder %v771, %v827
        %vm829 = vcmp.ge.s32.totalorder %v772, %v827
        %vm830 = vcmp.ge.s32.totalorder %v797, %v827
        %vm831 = vcmp.ge.s32.totalorder %v798, %v827
        %vm832 = vcmp.ge.s32.totalorder %v799, %v827
        %vm833 = vcmp.ge.s32.totalorder %v800, %v827
        %vm834 = vcmp.ge.s32.totalorder %v801, %v827
        %vm835 = vcmp.ge.s32.totalorder %v802, %v827
        %vm836 = vcmp.ge.s32.totalorder %v803, %v827
        %vm837 = vcmp.ge.s32.totalorder %v804, %v827
        %vm838 = vcmp.ge.s32.totalorder %v805, %v827
        %vm839 = vcmp.ge.s32.totalorder %v806, %v827
        %vm840 = vcmp.ge.s32.totalorder %v807, %v827
        %vm841 = vcmp.ge.s32.totalorder %v808, %v827
        %vm842 = vcmp.ge.s32.totalorder %v809, %v827
        %vm843 = vcmp.ge.s32.totalorder %v810, %v827
        %vm844 = vcmp.ge.s32.totalorder %v811, %v827
        %vm845 = vcmp.ge.s32.totalorder %v812, %v827
        %vm846 = vcmp.ge.s32.totalorder %v813, %v827
        %vm847 = vcmp.ge.s32.totalorder %v814, %v827
        %vm848 = vcmp.ge.s32.totalorder %v815, %v827
        %vm849 = vcmp.ge.s32.totalorder %v816, %v827
        %vm850 = vcmp.ge.s32.totalorder %v817, %v827
        %vm851 = vcmp.ge.s32.totalorder %v818, %v827
        %vm852 = vcmp.ge.s32.totalorder %v819, %v827
        %vm853 = vcmp.ge.s32.totalorder %v820, %v827
        %vm854 = vcmp.ge.s32.totalorder %v821, %v827
        %vm855 = vcmp.ge.s32.totalorder %v822, %v827
        %vm856 = vcmp.ge.s32.totalorder %v823, %v827
        %vm857 = vcmp.ge.s32.totalorder %v824, %v827
        %vm858 = vcmp.ge.s32.totalorder %v825, %v827
        %vm859 = vcmp.ge.s32.totalorder %v826, %v827
        %v860 = vadd.s32 %v827, 16
        %vm861 = vcmp.lt.s32.totalorder %v771, %v860
        %vm862 = vcmp.lt.s32.totalorder %v772, %v860
        %vm863 = vcmp.lt.s32.totalorder %v797, %v860
        %vm864 = vcmp.lt.s32.totalorder %v798, %v860
        %vm865 = vcmp.lt.s32.totalorder %v799, %v860
        %vm866 = vcmp.lt.s32.totalorder %v800, %v860
        %vm867 = vcmp.lt.s32.totalorder %v801, %v860
        %vm868 = vcmp.lt.s32.totalorder %v802, %v860
        %vm869 = vcmp.lt.s32.totalorder %v803, %v860
        %vm870 = vcmp.lt.s32.totalorder %v804, %v860
        %vm871 = vcmp.lt.s32.totalorder %v805, %v860
        %vm872 = vcmp.lt.s32.totalorder %v806, %v860
        %vm873 = vcmp.lt.s32.totalorder %v807, %v860
        %vm874 = vcmp.lt.s32.totalorder %v808, %v860
        %vm875 = vcmp.lt.s32.totalorder %v809, %v860
        %vm876 = vcmp.lt.s32.totalorder %v810, %v860
        %vm877 = vcmp.lt.s32.totalorder %v811, %v860
        %vm878 = vcmp.lt.s32.totalorder %v812, %v860
        %vm879 = vcmp.lt.s32.totalorder %v813, %v860
        %vm880 = vcmp.lt.s32.totalorder %v814, %v860
        %vm881 = vcmp.lt.s32.totalorder %v815, %v860
        %vm882 = vcmp.lt.s32.totalorder %v816, %v860
        %vm883 = vcmp.lt.s32.totalorder %v817, %v860
        %vm884 = vcmp.lt.s32.totalorder %v818, %v860
        %vm885 = vcmp.lt.s32.totalorder %v819, %v860
        %vm886 = vcmp.lt.s32.totalorder %v820, %v860
        %vm887 = vcmp.lt.s32.totalorder %v821, %v860
        %vm888 = vcmp.lt.s32.totalorder %v822, %v860
        %vm889 = vcmp.lt.s32.totalorder %v823, %v860
        %vm890 = vcmp.lt.s32.totalorder %v824, %v860
        %vm891 = vcmp.lt.s32.totalorder %v825, %v860
        %vm892 = vcmp.lt.s32.totalorder %v826, %v860
        %vm893 = vmand %vm828, %vm861
        %vm894 = vmand %vm829, %vm862
        %vm895 = vmand %vm830, %vm863
        %vm896 = vmand %vm831, %vm864
        %vm897 = vmand %vm832, %vm865
        %vm898 = vmand %vm833, %vm866
        %vm899 = vmand %vm834, %vm867
        %vm900 = vmand %vm835, %vm868
        %vm901 = vmand %vm836, %vm869
        %vm902 = vmand %vm837, %vm870
        %vm903 = vmand %vm838, %vm871
        %vm904 = vmand %vm839, %vm872
        %vm905 = vmand %vm840, %vm873
        %vm906 = vmand %vm841, %vm874
        %vm907 = vmand %vm842, %vm875
        %vm908 = vmand %vm843, %vm876
        %vm909 = vmand %vm844, %vm877
        %vm910 = vmand %vm845, %vm878
        %vm911 = vmand %vm846, %vm879
        %vm912 = vmand %vm847, %vm880
        %vm913 = vmand %vm848, %vm881
        %vm914 = vmand %vm849, %vm882
        %vm915 = vmand %vm850, %vm883
        %vm916 = vmand %vm851, %vm884
        %vm917 = vmand %vm852, %vm885
        %vm918 = vmand %vm853, %vm886
        %vm919 = vmand %vm854, %vm887
        %vm920 = vmand %vm855, %vm888
        %vm921 = vmand %vm856, %vm889
        %vm922 = vmand %vm857, %vm890
        %vm923 = vmand %vm858, %vm891
        %vm924 = vmand %vm859, %vm892
        %v925 = vsel %vm893, 1, 0
        %v926 = vsel %vm894, 1, 0
        %v927 = vsel %vm895, 1, 0
        %v928 = vsel %vm896, 1, 0
        %v929 = vsel %vm897, 1, 0
        %v930 = vsel %vm898, 1, 0
        %v931 = vsel %vm899, 1, 0
        %v932 = vsel %vm900, 1, 0
        %v933 = vsel %vm901, 1, 0
        %v934 = vsel %vm902, 1, 0
        %v935 = vsel %vm903, 1, 0
        %v936 = vsel %vm904, 1, 0
        %v937 = vsel %vm905, 1, 0
        %v938 = vsel %vm906, 1, 0
        %v939 = vsel %vm907, 1, 0
        %v940 = vsel %vm908, 1, 0
        %v941 = vsel %vm909, 1, 0
        %v942 = vsel %vm910, 1, 0
        %v943 = vsel %vm911, 1, 0
        %v944 = vsel %vm912, 1, 0
        %v945 = vsel %vm913, 1, 0
        %v946 = vsel %vm914, 1, 0
        %v947 = vsel %vm915, 1, 0
        %v948 = vsel %vm916, 1, 0
        %v949 = vsel %vm917, 1, 0
        %v950 = vsel %vm918, 1, 0
        %v951 = vsel %vm919, 1, 0
        %v952 = vsel %vm920, 1, 0
        %v953 = vsel %vm921, 1, 0
        %v954 = vsel %vm922, 1, 0
        %v955 = vsel %vm923, 1, 0
        %v956 = vsel %vm924, 1, 0
        %v957 = vcvt.s32.f32 %v925
        %v958 = vcvt.s32.f32 %v926
        %v959 = vcvt.s32.f32 %v927
        %v960 = vcvt.s32.f32 %v928
        %v961 = vcvt.s32.f32 %v929
        %v962 = vcvt.s32.f32 %v930
        %v963 = vcvt.s32.f32 %v931
        %v964 = vcvt.s32.f32 %v932
        %v965 = vcvt.s32.f32 %v933
        %v966 = vcvt.s32.f32 %v934
        %v967 = vcvt.s32.f32 %v935
        %v968 = vcvt.s32.f32 %v936
        %v969 = vcvt.s32.f32 %v937
        %v970 = vcvt.s32.f32 %v938
        %v971 = vcvt.s32.f32 %v939
        %v972 = vcvt.s32.f32 %v940
        %v973 = vcvt.s32.f32 %v941
        %v974 = vcvt.s32.f32 %v942
        %v975 = vcvt.s32.f32 %v943
        %v976 = vcvt.s32.f32 %v944
        %v977 = vcvt.s32.f32 %v945
        %v978 = vcvt.s32.f32 %v946
        %v979 = vcvt.s32.f32 %v947
        %v980 = vcvt.s32.f32 %v948
        %v981 = vcvt.s32.f32 %v949
        %v982 = vcvt.s32.f32 %v950
        %v983 = vcvt.s32.f32 %v951
        %v984 = vcvt.s32.f32 %v952
        %v985 = vcvt.s32.f32 %v953
        %v986 = vcvt.s32.f32 %v954
        %v987 = vcvt.s32.f32 %v955
        %v988 = vcvt.s32.f32 %v956
        %989 = vmatprep.subr.mxu0 0.0
        %990 = vmatpush1.msra.mxu0 %v957
        %991 = vmatprep.subr.mxu0 0.0
        %992 = vmatpush1.msra.mxu0 %v958
        %993 = vmatprep.subr.mxu0 0.0
        %994 = vmatpush1.msra.mxu0 %v959
        %995 = vmatprep.subr.mxu0 0.0
        %996 = vmatpush1.msra.mxu0 %v960
        %997 = vmatprep.subr.mxu0 0.0
        %998 = vmatpush1.msra.mxu0 %v961
        %999 = vmatprep.subr.mxu0 0.0
        %1000 = vmatpush1.msra.mxu0 %v962
        %1001 = vmatprep.subr.mxu0 0.0
        %1002 = vmatpush1.msra.mxu0 %v963
        %1003 = vmatprep.subr.mxu0 0.0
        %1004 = vmatpush1.msra.mxu0 %v964
        %1005 = vmatprep.subr.mxu0 0.0
        %1006 = vmatpush1.msra.mxu0 %v965
        %1007 = vmatprep.subr.mxu0 0.0
        %1008 = vmatpush1.msra.mxu0 %v966
        %1009 = vmatprep.subr.mxu0 0.0
        %1010 = vmatpush1.msra.mxu0 %v967
        %1011 = vmatprep.subr.mxu0 0.0
        %1012 = vmatpush1.msra.mxu0 %v968
        %1013 = vmatprep.subr.mxu0 0.0
        %1014 = vmatpush1.msra.mxu0 %v969
        %1015 = vmatprep.subr.mxu0 0.0
        %1016 = vmatpush1.msra.mxu0 %v970
        %1017 = vmatprep.subr.mxu0 0.0
        %1018 = vmatpush1.msra.mxu0 %v971
        %1019 = vmatprep.subr.mxu0 0.0
        %1020 = vmatpush1.msra.mxu0 %v972
        %1021 = vmatprep.subr.mxu0 0.0
        %1022 = vmatpush1.msra.mxu0 %v973
        %1023 = vmatprep.subr.mxu0 0.0
        %1024 = vmatpush1.msra.mxu0 %v974
        %1025 = vmatprep.subr.mxu0 0.0
        %1026 = vmatpush1.msra.mxu0 %v975
        %1027 = vmatprep.subr.mxu0 0.0
        %1028 = vmatpush1.msra.mxu0 %v976
        %1029 = vmatprep.subr.mxu0 0.0
        %1030 = vmatpush1.msra.mxu0 %v977
        %1031 = vmatprep.subr.mxu0 0.0
        %1032 = vmatpush1.msra.mxu0 %v978
        %1033 = vmatprep.subr.mxu0 0.0
        %1034 = vmatpush1.msra.mxu0 %v979
        %1035 = vmatprep.subr.mxu0 0.0
        %1036 = vmatpush1.msra.mxu0 %v980
        %1037 = vmatprep.subr.mxu0 0.0
        %1038 = vmatpush1.msra.mxu0 %v981
        %1039 = vmatprep.subr.mxu0 0.0
        %1040 = vmatpush1.msra.mxu0 %v982
        %1041 = vmatprep.subr.mxu0 0.0
        %1042 = vmatpush1.msra.mxu0 %v983
        %1043 = vmatprep.subr.mxu0 0.0
        %1044 = vmatpush1.msra.mxu0 %v984
        %1045 = vmatprep.subr.mxu0 0.0
        %1046 = vmatpush1.msra.mxu0 %v985
        %1047 = vmatprep.subr.mxu0 0.0
        %1048 = vmatpush1.msra.mxu0 %v986
        %1049 = vmatprep.subr.mxu0 0.0
        %1050 = vmatpush1.msra.mxu0 %v987
        %1051 = vmatprep.subr.mxu0 0.0
        %1052 = vmatpush1.msra.mxu0 %v988
        %1053 = vmatprep.mubr.f32.mxu0 %v766
        %1054 = vmatmul.mubr.f32.gmra.mrb[0].mxu0 %v765
        %v1055 = vpop.f32.mrb[0].mxu0
        %v1056 = vadd.f32 1e-08, %v1055
        %v1057 = vpop.f32.mrb[0].mxu0
        %1058 = vdwg.mxu0
        %v1059 = vrcp.pop %v1056
        %vm1060 = vcmask 130048
        %v1062 = vsel %vm1060, %v1059, 0
        %1064 = vmatprep.subr.mxu0 %v794
        %1065 = vmatpush1.msra.mxu0 %v793
        %1066 = vmatprep.subr.mxu0 %v796
        %1067 = vmatpush1.msra.mxu0 %v795
        %1068 = vmatprep.subr.mxu0 0.0
        %1069 = vmatpush1.msra.mxu0 0.0
        %1070 = vmatprep.subr.mxu0 0.0
        %1071 = vmatpush1.msra.mxu0 0.0
        %1072 = vmatprep.subr.mxu0 0.0
        %1073 = vmatpush1.msra.mxu0 0.0
        %1074 = vmatprep.subr.mxu0 0.0
        %1075 = vmatpush1.msra.mxu0 0.0
        %1076 = vmatprep.subr.mxu0 0.0
        %1077 = vmatpush1.msra.mxu0 0.0
        %1078 = vmatprep.subr.mxu0 0.0
        %1079 = vmatpush1.msra.mxu0 0.0
        %1080 = vmatprep.subr.mxu0 0.0
        %1081 = vmatpush1.msra.mxu0 0.0
        %1082 = vmatprep.subr.mxu0 0.0
        %1083 = vmatpush1.msra.mxu0 0.0
        %1084 = vmatprep.subr.mxu0 0.0
        %1085 = vmatpush1.msra.mxu0 0.0
        %1086 = vmatprep.subr.mxu0 0.0
        %1087 = vmatpush1.msra.mxu0 0.0
        %1088 = vmatprep.subr.mxu0 0.0
        %1089 = vmatpush1.msra.mxu0 0.0
        %1090 = vmatprep.subr.mxu0 0.0
        %1091 = vmatpush1.msra.mxu0 0.0
        %1092 = vmatprep.subr.mxu0 0.0
        %1093 = vmatpush1.msra.mxu0 0.0
        %1094 = vmatprep.subr.mxu0 0.0
        %1095 = vmatpush1.msra.mxu0 0.0
        %1096 = vmatprep.subr.mxu0 0.0
        %1097 = vmatpush1.msra.mxu0 0.0
        %1098 = vmatprep.subr.mxu0 0.0
        %1099 = vmatpush1.msra.mxu0 0.0
        %1100 = vmatprep.subr.mxu0 0.0
        %1101 = vmatpush1.msra.mxu0 0.0
        %1102 = vmatprep.subr.mxu0 0.0
        %1103 = vmatpush1.msra.mxu0 0.0
        %1104 = vmatprep.subr.mxu0 0.0
        %1105 = vmatpush1.msra.mxu0 0.0
        %1106 = vmatprep.subr.mxu0 0.0
        %1107 = vmatpush1.msra.mxu0 0.0
        %1108 = vmatprep.subr.mxu0 0.0
        %1109 = vmatpush1.msra.mxu0 0.0
        %1110 = vmatprep.subr.mxu0 0.0
        %1111 = vmatpush1.msra.mxu0 0.0
        %1112 = vmatprep.subr.mxu0 0.0
        %1113 = vmatpush1.msra.mxu0 0.0
        %1114 = vmatprep.subr.mxu0 0.0
        %1115 = vmatpush1.msra.mxu0 0.0
        %1116 = vmatprep.subr.mxu0 0.0
        %1117 = vmatpush1.msra.mxu0 0.0
        %1118 = vmatprep.subr.mxu0 0.0
        %1119 = vmatpush1.msra.mxu0 0.0
        %1120 = vmatprep.subr.mxu0 0.0
        %1121 = vmatpush1.msra.mxu0 0.0
        %1122 = vmatprep.subr.mxu0 0.0
        %1123 = vmatpush1.msra.mxu0 0.0
        %1124 = vmatprep.subr.mxu0 0.0
        %1125 = vmatpush1.msra.mxu0 0.0
        %1126 = vmatprep.subr.mxu0 0.0
        %1127 = vmatpush1.msra.mxu0 0.0
        %1128 = vmatprep.mubr.f32.mxu0 0.0
        %1129 = vmatmul.mubr.f32.gmra.mrb[0].mxu0 %v1062
        %v1130 = vpop.f32.mrb[0].mxu0
        %v1131 = vadd.f32 0.0, %v1130
        %v1132 = vpop.f32.mrb[0].mxu0
        %v1133 = vadd.f32 0.0, %v1132
        %1134 = vdwg.mxu0
        %v1135 = vmul.f32 %v765, %v1131
        %v1136 = vmul.f32 %v766, %v1133
        %v1137 = vlaneseq
        %v1138 = vshrl.u32 %v1137, 7
        %v1139 = vsub.s32 0, %v1138
        %v1140 = vrot.slane %v1135, %v1139
        %v1141 = vlaneseq
        %v1142 = vshrl.u32 %v1141, 7
        %v1143 = vsub.s32 0, %v1142
        %v1144 = vrot.slane %v1136, %v1143
        %v1145 = vmul.f32 %v793, %v1140
        %v1146 = vmul.f32 %v794, %v1144
        %v1147 = vmul.f32 %v795, %v1140
        %v1148 = vmul.f32 %v796, %v1144
        %1149 = vmatprep.subr.mxu0 0.0
        %1150 = vmatpush1.msra.mxu0 %v363
        %1151 = vmatprep.subr.mxu0 0.0
        %1152 = vmatpush1.msra.mxu0 %v364
        %1153 = vmatprep.subr.mxu0 0.0
        %1154 = vmatpush1.msra.mxu0 %v365
        %1155 = vmatprep.subr.mxu0 0.0
        %1156 = vmatpush1.msra.mxu0 %v366
        %1157 = vmatprep.subr.mxu0 0.0
        %1158 = vmatpush1.msra.mxu0 %v367
        %1159 = vmatprep.subr.mxu0 0.0
        %1160 = vmatpush1.msra.mxu0 %v368
        %1161 = vmatprep.subr.mxu0 0.0
        %1162 = vmatpush1.msra.mxu0 %v369
        %1163 = vmatprep.subr.mxu0 0.0
        %1164 = vmatpush1.msra.mxu0 %v370
        %1165 = vmatprep.subr.mxu0 0.0
        %1166 = vmatpush1.msra.mxu0 %v371
        %1167 = vmatprep.subr.mxu0 0.0
        %1168 = vmatpush1.msra.mxu0 %v372
        %1169 = vmatprep.subr.mxu0 0.0
        %1170 = vmatpush1.msra.mxu0 %v373
        %1171 = vmatprep.subr.mxu0 0.0
        %1172 = vmatpush1.msra.mxu0 %v374
        %1173 = vmatprep.subr.mxu0 0.0
        %1174 = vmatpush1.msra.mxu0 %v375
        %1175 = vmatprep.subr.mxu0 0.0
        %1176 = vmatpush1.msra.mxu0 %v376
        %1177 = vmatprep.subr.mxu0 0.0
        %1178 = vmatpush1.msra.mxu0 %v377
        %1179 = vmatprep.subr.mxu0 0.0
        %1180 = vmatpush1.msra.mxu0 %v378
        %1181 = vmatprep.subr.mxu0 0.0
        %1182 = vmatpush1.msra.mxu0 %v379
        %1183 = vmatprep.subr.mxu0 0.0
        %1184 = vmatpush1.msra.mxu0 %v380
        %1185 = vmatprep.subr.mxu0 0.0
        %1186 = vmatpush1.msra.mxu0 %v381
        %1187 = vmatprep.subr.mxu0 0.0
        %1188 = vmatpush1.msra.mxu0 %v382
        %1189 = vmatprep.subr.mxu0 0.0
        %1190 = vmatpush1.msra.mxu0 %v383
        %1191 = vmatprep.subr.mxu0 0.0
        %1192 = vmatpush1.msra.mxu0 %v384
        %1193 = vmatprep.subr.mxu0 0.0
        %1194 = vmatpush1.msra.mxu0 %v385
        %1195 = vmatprep.subr.mxu0 0.0
        %1196 = vmatpush1.msra.mxu0 %v386
        %1197 = vmatprep.subr.mxu0 0.0
        %1198 = vmatpush1.msra.mxu0 %v387
        %1199 = vmatprep.subr.mxu0 0.0
        %1200 = vmatpush1.msra.mxu0 %v388
        %1201 = vmatprep.subr.mxu0 0.0
        %1202 = vmatpush1.msra.mxu0 %v389
        %1203 = vmatprep.subr.mxu0 0.0
        %1204 = vmatpush1.msra.mxu0 %v390
        %1205 = vmatprep.subr.mxu0 0.0
        %1206 = vmatpush1.msra.mxu0 %v391
        %1207 = vmatprep.subr.mxu0 0.0
        %1208 = vmatpush1.msra.mxu0 %v392
        %1209 = vmatprep.subr.mxu0 0.0
        %1210 = vmatpush1.msra.mxu0 %v393
        %1211 = vmatprep.subr.mxu0 0.0
        %1212 = vmatpush1.msra.mxu0 %v394
        %1213 = vmatprep.mubr.f32.mxu0 %v1146
        %1214 = vmatmul.mubr.f32.gmra.mrb[0].mxu0 %v1145
        %v1215 = vpop.f32.mrb[0].mxu0
        %v1216 = vadd.f32 0.0, %v1215
        %v1217 = vpop.f32.mrb[0].mxu0
        %1218 = vmatprep.mubr.f32.mxu0 %v1148
        %1219 = vmatmul.mubr.f32.gmra.mrb[0].mxu0 %v1147
        %v1220 = vpop.f32.mrb[0].mxu0
        %v1221 = vadd.f32 0.0, %v1220
        %v1222 = vpop.f32.mrb[0].mxu0
        %1223 = vdwg.mxu0
        %1224 = vst [vmem:[%s353] sm:$0xff] %v1216
        %1225 = vst [vmem:[%s353 + $0x8] sm:$0xff] %v1221
        %v1228 = vcombine.low %v1135, %v1136
        %v1230 = vunpack.c.l.s4 1966171168
        %v1231 = vunpack.c.0.s8 %v1230
        %v1232 = vlaneseq
        %v1233 = vshrl.u32 %v1232, 7
        %v1234 = vsub.s32 %v1231, %v1233
        %v1235 = vrot.slane %v1228, %v1234
        %v1237 = vunpack.c.l.s4 1966171168
        %v1238 = vunpack.c.0.s8 %v1237
        %v1239 = vlaneseq
        %v1240 = vshrl.u32 %v1239, 7
        %v1241 = vsub.s32 %v1238, %v1240
        %v1242 = vrot.slane %v1235, %v1241
        %v1244 = vlaneseq
        %vm1245 = vcmp.ge.s32.totalorder %v1244, 0
        %vm1246 = vcmp.lt.s32.totalorder %v1244, 256
        %vm1247 = vmand %vm1245, %vm1246
        %1248 = vst.msk [vmem:[%s360] sm:$0x3] %vm1247, %v1242
        %s1249 = sand.u32 %s176, 1
        %s1250 = scalar_lea.sflag [#allocation5], %s1249
        %s1251 = sand.u32 %s176, 1
        %s1252 = smul.addr %s1251, 16
        %s1253 = scalar_lea.vmem [#allocation9], %s1252
        %s1254 = sand.u32 %s202, 1
        %s1255 = scalar_lea.sflag [#allocation11], %s1254
        %s1256 = sand.u32 %s202, 1
        %s1257 = smul.addr %s1256, 2
        %s1258 = scalar_lea.vmem [#allocation10], %s1257
        // Predicated region
        $region57: #{tpu_custom_call.1} parent=43 // pred_check
          %p1259 = pneg %p186
        $region58: #{tpu_custom_call.1} parent=43 // pred_check_branch
          %1261 = sbr.rel (%p1259) target = $region60
        $region59: #{tpu_custom_call.1} parent=43 // pred_region
          %s1262 = smul.u32 2, %s32
          %s1264 = ssub.s32 256, 256
          %1265 = vsyncadd %s1250, %s1264
          %s1266 = smul.addr %s1262, 128
          %s1267 = scalar_lea.hbm %s6, %s1266
          %s1268 = sshll.u32 %s1253, 4
          %s1269 = int_to_ptr.vmem [resolvable:$true] %s1268
          %1274 = dma.vmem_to_hbm [thread:$0]  %s1269, 256, %s1267, %s1250, 128, 128, 8
        $region60: #{tpu_custom_call.1} parent=43 // pred_fallthru
          _
        // Predicated region
        $region61: #{tpu_custom_call.1} parent=43 // pred_check
          %p1275 = pneg %p212
        $region62: #{tpu_custom_call.1} parent=43 // pred_check_branch
          %1277 = sbr.rel (%p1275) target = $region64
        $region63: #{tpu_custom_call.1} parent=43 // pred_region
          %s1279 = ssub.s32 32, 32
          %1280 = vsyncadd %s1255, %s1279
          %s1281 = smul.addr %s32, 2
          %s1282 = smul.addr %s1281, 16
          %s1283 = scalar_lea.hbm %s7, %s1282
          %s1285 = sshll.u32 %s1258, 4
          %s1286 = int_to_ptr.vmem [resolvable:$true] %s1285
          %1288 = dma.vmem_to_hbm [thread:$0]  %s1286, 32, %s1283, %s1255
        $region64: #{tpu_custom_call.1} parent=43 // pred_fallthru
          _
      $region44: #{tpu_custom_call.1} parent=5 // pred_fallthru
        _
      %p1289 = scmp.le.s32.totalorder 2, %s27
      // Predicated region
      $region65: #{tpu_custom_call.1} parent=5 // pred_check
        %p1290 = pneg %p1289
      $region66: #{tpu_custom_call.1} parent=5 // pred_check_branch
        %1292 = sbr.rel (%p1290) target = $region68
      $region67: #{tpu_custom_call.1} parent=5 // pred_region
        %s1293 = ssub.s32 %s27, 2
        // Predicated region
        $region69: #{tpu_custom_call.1} parent=67 // pred_check
          %p1294 = pneg %p192
        $region70: #{tpu_custom_call.1} parent=67 // pred_check_branch
          %1296 = sbr.rel (%p1294) target = $region72
        $region71: #{tpu_custom_call.1} parent=67 // pred_region
          %s1297 = sand.u32 %s177, 1
          %s1298 = scalar_lea.sflag [#allocation5], %s1297
          %s1299 = sand.u32 %s177, 1
          %s1300 = smul.addr %s1299, 16
          %s1301 = scalar_lea.vmem [#allocation9], %s1300
          %1302 = dma.done %s1298, 256
        $region72: #{tpu_custom_call.1} parent=67 // pred_fallthru
          _
        // Predicated region
        $region73: #{tpu_custom_call.1} parent=67 // pred_check
          %p1303 = pneg %p218
        $region74: #{tpu_custom_call.1} parent=67 // pred_check_branch
          %1305 = sbr.rel (%p1303) target = $region76
        $region75: #{tpu_custom_call.1} parent=67 // pred_region
          %s1306 = sand.u32 %s203, 1
          %s1307 = scalar_lea.sflag [#allocation11], %s1306
          %s1308 = sand.u32 %s203, 1
          %s1309 = smul.addr %s1308, 2
          %s1310 = scalar_lea.vmem [#allocation10], %s1309
          %1311 = dma.done %s1307, 32
        $region76: #{tpu_custom_call.1} parent=67 // pred_fallthru
          _
      $region68: #{tpu_custom_call.1} parent=5 // pred_fallthru
        _
    $region6: #{tpu_custom_call.1} parent=1 // loop_footer
      %s31 = sadd.s32 1, %s27
    $region7: #{tpu_custom_call.1} parent=1 // loop_footer_branch
      %26 = sbr.rel target = $region3
    $region8: #{tpu_custom_call.1} parent=1 // loop_exit
      _
    %1312 = vsyncpa [#allocation4], 1
    %s1313 = scalar_lea.sflag [#allocation4], 1
    %1314 = vsyncpa %s1313, 1
    %1315 = vsyncpa [#allocation7], 1
    %s1316 = scalar_lea.sflag [#allocation7], 1
    %1317 = vsyncpa %s1316, 1
    %1318 = vsyncpa [#allocation5], 1
    %s1319 = scalar_lea.sflag [#allocation5], 1
    %1320 = vsyncpa %s1319, 1
    %1321 = vsyncpa [#allocation11], 1
    %s1322 = scalar_lea.sflag [#allocation11], 1
    %1323 = vsyncpa %s1322, 1

</llo_original>
